<compile_context>
chip_gen: v7x
topology: tpu7x:2x2x1
jax: 0.10.0
libtpu: 0.0.40
codegen_flags: <defaults>
</compile_context>

<pallas_src>
import jax
import jax.numpy as jnp
from jax.experimental import pallas as pl
from jax.experimental.pallas import tpu as pltpu


# ----------------------------- Pallas kernels -----------------------------

def _lstm_kernel(x_ref, len_ref, wih_ref, whh_ref, b_ref, out_ref,
                 xi_ref, xf_ref, xg_ref, xo_ref):
    """Single-layer LSTM, PyTorch gate order (i, f, g, o), zero-padded outputs.

    x_ref:   (T, Bt, E)   bf16 time-major embedded input (batch tile)
    len_ref: (Bt, 1)      int32 sequence lengths
    wih_ref: (4, E, H)    bf16 input weights, one lane-aligned block per gate
    whh_ref: (4, H, H)    bf16 recurrent weights per gate
    b_ref:   (4, 1, H)    f32 combined bias (b_ih + b_hh) per gate
    out_ref: (T, Bt, H)   bf16 outputs (zeroed where t >= len)
    x*_ref:  (T, Bt, H)   f32 VMEM scratch, hoisted input projections per gate
    """
    T, Bt, E = x_ref.shape
    H = whh_ref.shape[-1]

    # ---- Hoisted input projection: one big matmul per gate, done once. ----
    x_flat = x_ref[...].reshape(T * Bt, E)                      # bf16 (T*Bt, E)
    for g, g_ref in enumerate((xi_ref, xf_ref, xg_ref, xo_ref)):
        xg = jnp.dot(x_flat, wih_ref[g],
                     preferred_element_type=jnp.float32) + b_ref[g]
        g_ref[...] = xg.reshape(T, Bt, H)

    whh = [whh_ref[g] for g in range(4)]                        # loop-invariant
    lens = len_ref[...]                                         # (Bt, 1) int32

    def step(t, carry):
        h, c = carry
        hb = h.astype(jnp.bfloat16)
        gi = xi_ref[t] + jnp.dot(hb, whh[0], preferred_element_type=jnp.float32)
        gf = xf_ref[t] + jnp.dot(hb, whh[1], preferred_element_type=jnp.float32)
        gg = xg_ref[t] + jnp.dot(hb, whh[2], preferred_element_type=jnp.float32)
        go = xo_ref[t] + jnp.dot(hb, whh[3], preferred_element_type=jnp.float32)
        i_g = jax.nn.sigmoid(gi)
        f_g = jax.nn.sigmoid(gf)
        g_g = jnp.tanh(gg)
        o_g = jax.nn.sigmoid(go)
        c_new = f_g * c + i_g * g_g
        h_new = o_g * jnp.tanh(c_new)
        out_ref[t] = jnp.where(lens > t, h_new, 0.0).astype(jnp.bfloat16)
        return h_new, c_new

    h0 = jnp.zeros((Bt, H), jnp.float32)
    jax.lax.fori_loop(0, T, step, (h0, h0))


def _ian_head_kernel(asp_ref, ctx_ref, asp_len_ref, ctx_len_ref,
                     wk_a, bk_a, wq_a, bq_a, wbl_a, wp_a, bp_a,
                     wk_c, bk_c, wq_c, bq_c, wbl_c, wp_c, bp_c,
                     wd_a, wd_c, bd_ref, out_ref):
    """Length-normalized pooling + two bi-linear attentions + final dense.

    asp_ref: (Ta, Bt, H) bf16 aspect LSTM outputs (time-major, zero-padded)
    ctx_ref: (Tc, Bt, H) bf16 context LSTM outputs
    *_len_ref: (Bt, 1)   f32 clamped (>=1) sequence lengths
    wd_a/wd_c: (H, Ppad) bf16 halves of the final dense weight, lane-padded
    out_ref: (Bt, Ppad)  f32 logits (lane-dense, sliced to P in the wrapper)
    """
    asp = asp_ref[...]
    ctx = ctx_ref[...]

    inv_asp = pl.reciprocal(asp_len_ref[...], approx=True)      # (Bt, 1)
    inv_ctx = pl.reciprocal(ctx_len_ref[...], approx=True)
    # Accumulate the pooling sums directly in f32 (no f32 copy of the bf16
    # sequence tensors is materialized).
    asp_pool = jnp.sum(asp, axis=0, dtype=jnp.float32) * inv_asp   # (Bt, H)
    ctx_pool = jnp.sum(ctx, axis=0, dtype=jnp.float32) * inv_ctx   # (Bt, H)

    def bilinear_attention(k, q, wk, bk, wq, bq, wbl, wp, bp):
        # k: (T, Bt, H) bf16, q: (Bt, H) f32  ->  (Bt, H) f32   (q_len == 1)
        T, Bt, H = k.shape
        kx = (jnp.dot(k.reshape(T * Bt, H), wk[...],
                      preferred_element_type=jnp.float32).reshape(T, Bt, H)
              + bk[...])                                         # (T, Bt, H) f32
        qx = jnp.dot(q.astype(jnp.bfloat16), wq[...],
                     preferred_element_type=jnp.float32) + bq[...]
        qw = jnp.dot(qx.astype(jnp.bfloat16), wbl[...],
                     preferred_element_type=jnp.float32)         # (Bt, H)
        score = jnp.sum(qw[None, :, :] * kx, axis=-1, keepdims=True)  # (T,Bt,1)
        score = score - jnp.max(score, axis=0, keepdims=True)
        e = jnp.exp(score)
        denom = jnp.sum(e, axis=0, keepdims=True)                # (1, Bt, 1)
        attn = e * pl.reciprocal(denom, approx=True)             # softmax over T
        mix = jnp.sum(attn * kx, axis=0)                         # (Bt, H)
        return jnp.dot(mix.astype(jnp.bfloat16), wp[...],
                       preferred_element_type=jnp.float32) + bp[...]

    aspect_final = bilinear_attention(asp, ctx_pool,
                                      wk_a, bk_a, wq_a, bq_a, wbl_a, wp_a, bp_a)
    context_final = bilinear_attention(ctx, asp_pool,
                                       wk_c, bk_c, wq_c, bq_c, wbl_c, wp_c, bp_c)

    # cat([aspect_final, context_final], -1) @ Wd + bd, matmul split per half.
    out_ref[...] = (jnp.dot(aspect_final.astype(jnp.bfloat16), wd_a[...],
                            preferred_element_type=jnp.float32)
                    + jnp.dot(context_final.astype(jnp.bfloat16), wd_c[...],
                              preferred_element_type=jnp.float32)
                    + bd_ref[...])


# ----------------------------- wrappers -----------------------------

def _full_spec(shape):
    zeros = (0,) * len(shape)
    return pl.BlockSpec(shape, lambda i, _z=zeros: _z)


def _pick_btile(b_pad, cap=64):
    bt = min(b_pad, cap)
    while b_pad % bt:
        bt -= 16
    return bt


def _lstm_tm(x_tm, lengths, wih, whh, b, *, b_tile):
    """x_tm: (T, B_pad, E) bf16, lengths: (B_pad, 1) int32 -> (T, B_pad, H) bf16."""
    T, B_pad, E = x_tm.shape
    H = whh.shape[-1]
    grid = (B_pad // b_tile,)
    return pl.pallas_call(
        _lstm_kernel,
        out_shape=jax.ShapeDtypeStruct((T, B_pad, H), jnp.bfloat16),
        grid=grid,
        in_specs=[
            pl.BlockSpec((T, b_tile, E), lambda i: (0, i, 0)),
            pl.BlockSpec((b_tile, 1), lambda i: (i, 0)),
            _full_spec((4, E, H)),
            _full_spec((4, H, H)),
            _full_spec((4, 1, H)),
        ],
        out_specs=pl.BlockSpec((T, b_tile, H), lambda i: (0, i, 0)),
        scratch_shapes=[pltpu.VMEM((T, b_tile, H), jnp.float32)] * 4,
        compiler_params=pltpu.CompilerParams(
            dimension_semantics=("parallel",)),
    )(x_tm, lengths, wih, whh, b)


def _ian_head(asp_h, ctx_h, asp_len_f, ctx_len_f, kp, *, b_tile):
    Ta, B_pad, H = asp_h.shape
    Tc = ctx_h.shape[0]
    P_pad = kp['dense_b'].shape[-1]
    grid = (B_pad // b_tile,)

    weight_args, weight_specs = [], []
    for side in ('asp', 'ctx'):
        for name in ('wk', 'bk', 'wq', 'bq', 'wbl', 'wp', 'bp'):
            a = kp[f'attn_{side}_{name}']
            weight_args.append(a)
            weight_specs.append(_full_spec(a.shape))
    for name in ('dense_wa', 'dense_wc', 'dense_b'):
        a = kp[name]
        weight_args.append(a)
        weight_specs.append(_full_spec(a.shape))

    return pl.pallas_call(
        _ian_head_kernel,
        out_shape=jax.ShapeDtypeStruct((B_pad, P_pad), jnp.float32),
        grid=grid,
        in_specs=[pl.BlockSpec((Ta, b_tile, H), lambda i: (0, i, 0)),
                  pl.BlockSpec((Tc, b_tile, H), lambda i: (0, i, 0)),
                  pl.BlockSpec((b_tile, 1), lambda i: (i, 0)),
                  pl.BlockSpec((b_tile, 1), lambda i: (i, 0))] + weight_specs,
        out_specs=pl.BlockSpec((b_tile, P_pad), lambda i: (i, 0)),
        compiler_params=pltpu.CompilerParams(
            dimension_semantics=("parallel",)),
    )(asp_h, ctx_h, asp_len_f, ctx_len_f, *weight_args)


def ian_forward(kp, text_raw_indices, aspect_indices, polarities_dim):
    if aspect_indices.ndim == 1:
        aspect_indices = aspect_indices[:, None]
    B = text_raw_indices.shape[0]

    SUB = 16                                    # bf16 sublane packing
    B_pad = ((B + SUB - 1) // SUB) * SUB
    b_tile = _pick_btile(B_pad)

    text_idx = jnp.pad(text_raw_indices, ((0, B_pad - B), (0, 0)))
    asp_idx = jnp.pad(aspect_indices, ((0, B_pad - B), (0, 0)))

    text_len = jnp.sum(text_idx != 0, axis=-1).astype(jnp.int32)[:, None]
    asp_len = jnp.sum(asp_idx != 0, axis=-1).astype(jnp.int32)[:, None]

    # Gather embeddings already time-major (no transposes between kernels).
    embed = kp['embed']
    ctx_x = jnp.take(embed, text_idx.T, axis=0).astype(jnp.bfloat16)   # (Tc,Bp,E)
    asp_x = jnp.take(embed, asp_idx.T, axis=0).astype(jnp.bfloat16)    # (Ta,Bp,E)

    asp_h = _lstm_tm(asp_x, asp_len, kp['asp_wih'], kp['asp_whh'], kp['asp_b'],
                     b_tile=b_tile)
    ctx_h = _lstm_tm(ctx_x, text_len, kp['ctx_wih'], kp['ctx_whh'], kp['ctx_b'],
                     b_tile=b_tile)

    # Clamp lengths to >=1 so padded (length-0) batch rows never divide by zero.
    asp_len_f = jnp.maximum(asp_len, 1).astype(jnp.float32)
    ctx_len_f = jnp.maximum(text_len, 1).astype(jnp.float32)

    logits_pad = _ian_head(asp_h, ctx_h, asp_len_f, ctx_len_f, kp, b_tile=b_tile)
    return logits_pad[:B, :polarities_dim]


# ----------------------------- parameter prep -----------------------------

def prepare_params(p):
    """Canonical f32 params (PyTorch-equivalent layout) -> kernel layout:
    per-gate stacked LSTM weights, bf16 matmul weights, lane-padded dense."""
    H = p['lstm_ctx_whh'].shape[0]
    P = p['dense_w'].shape[1]
    P_pad = ((P + 127) // 128) * 128
    bf = lambda a: a.astype(jnp.bfloat16)

    def split4(w):   # (in, 4H) -> (4, in, H), PyTorch gate order i|f|g|o
        return jnp.stack([w[:, g * H:(g + 1) * H] for g in range(4)], axis=0)

    def split4b(b):  # (1, 4H) -> (4, 1, H)
        return jnp.stack([b[:, g * H:(g + 1) * H] for g in range(4)], axis=0)

    kp = {
        'embed': p['embed'],
        'asp_wih': bf(split4(p['lstm_asp_wih'])),
        'asp_whh': bf(split4(p['lstm_asp_whh'])),
        'asp_b': split4b(p['lstm_asp_b']),
        'ctx_wih': bf(split4(p['lstm_ctx_wih'])),
        'ctx_whh': bf(split4(p['lstm_ctx_whh'])),
        'ctx_b': split4b(p['lstm_ctx_b']),
    }
    for side in ('asp', 'ctx'):
        for name in ('wk', 'wq', 'wbl', 'wp'):
            kp[f'attn_{side}_{name}'] = bf(p[f'attn_{side}_{name}'])
        for name in ('bk', 'bq', 'bp'):
            kp[f'attn_{side}_{name}'] = p[f'attn_{side}_{name}']
    wd_pad = jnp.pad(p['dense_w'], ((0, 0), (0, P_pad - P)))     # (2H, P_pad)
    kp['dense_wa'] = bf(wd_pad[:H])
    kp['dense_wc'] = bf(wd_pad[H:])
    kp['dense_b'] = jnp.pad(p['dense_b'], ((0, 0), (0, P_pad - P)))
    return kp


# ----------------------------- pure-JAX reference -----------------------------

def _lstm_ref(x, lengths, wih, whh, b):
    B, T, _ = x.shape
    H = whh.shape[0]

    def step(carry, x_t):
        h, c = carry
        g = x_t @ wih + h @ whh + b
        i = jax.nn.sigmoid(g[:, :H])
        f = jax.nn.sigmoid(g[:, H:2 * H])
        gg = jnp.tanh(g[:, 2 * H:3 * H])
        o = jax.nn.sigmoid(g[:, 3 * H:])
        c = f * c + i * gg
        h = o * jnp.tanh(c)
        return (h, c), h

    init = (jnp.zeros((B, H), jnp.float32), jnp.zeros((B, H), jnp.float32))
    _, hs = jax.lax.scan(step, init, jnp.transpose(x, (1, 0, 2)))
    hs = jnp.transpose(hs, (1, 0, 2))
    mask = (jnp.arange(T)[None, :] < lengths[:, None]).astype(jnp.float32)
    return hs * mask[:, :, None]


def _attn_ref(k, q, wk, bk, wq, bq, wbl, wp, bp):
    kx = jnp.einsum('bth,hd->btd', k, wk) + bk
    qx = q @ wq + bq
    qw = qx @ wbl
    score = jnp.einsum('bh,bth->bt', qw, kx)
    attn = jax.nn.softmax(score, axis=-1)
    mix = jnp.einsum('bt,bth->bh', attn, kx)
    return mix @ wp + bp


def ian_ref(p, text_raw_indices, aspect_indices):
    text_raw_len = jnp.sum(text_raw_indices != 0, axis=-1)
    aspect_len = jnp.sum(aspect_indices != 0, axis=-1)
    context = jnp.take(p['embed'], text_raw_indices, axis=0)
    aspect = jnp.take(p['embed'], aspect_indices, axis=0)
    aspect_h = _lstm_ref(aspect, aspect_len,
                         p['lstm_asp_wih'], p['lstm_asp_whh'], p['lstm_asp_b'])
    context_h = _lstm_ref(context, text_raw_len,
                          p['lstm_ctx_wih'], p['lstm_ctx_whh'], p['lstm_ctx_b'])
    asp_pool = jnp.sum(aspect_h, axis=1) / aspect_len.astype(jnp.float32)[:, None]
    ctx_pool = jnp.sum(context_h, axis=1) / text_raw_len.astype(jnp.float32)[:, None]
    aspect_final = _attn_ref(aspect_h, ctx_pool,
                             p['attn_asp_wk'], p['attn_asp_bk'], p['attn_asp_wq'],
                             p['attn_asp_bq'], p['attn_asp_wbl'], p['attn_asp_wp'],
                             p['attn_asp_bp'])
    context_final = _attn_ref(context_h, asp_pool,
                              p['attn_ctx_wk'], p['attn_ctx_bk'], p['attn_ctx_wq'],
                              p['attn_ctx_bq'], p['attn_ctx_wbl'], p['attn_ctx_wp'],
                              p['attn_ctx_bp'])
    x = jnp.concatenate([aspect_final, context_final], axis=-1)
    return x @ p['dense_w'] + p['dense_b']


# ----------------------------- setup / main -----------------------------

def init_params(key, vocab, embed_dim, hidden_dim, polarities_dim):
    E, H, P = embed_dim, hidden_dim, polarities_dim
    names_shapes = [
        ('embed', (vocab, E)),
        ('lstm_ctx_wih', (E, 4 * H)), ('lstm_ctx_whh', (H, 4 * H)), ('lstm_ctx_b', (1, 4 * H)),
        ('lstm_asp_wih', (E, 4 * H)), ('lstm_asp_whh', (H, 4 * H)), ('lstm_asp_b', (1, 4 * H)),
        ('attn_asp_wk', (H, H)), ('attn_asp_bk', (1, H)),
        ('attn_asp_wq', (H, H)), ('attn_asp_bq', (1, H)),
        ('attn_asp_wbl', (H, H)),
        ('attn_asp_wp', (H, H)), ('attn_asp_bp', (1, H)),
        ('attn_ctx_wk', (H, H)), ('attn_ctx_bk', (1, H)),
        ('attn_ctx_wq', (H, H)), ('attn_ctx_bq', (1, H)),
        ('attn_ctx_wbl', (H, H)),
        ('attn_ctx_wp', (H, H)), ('attn_ctx_bp', (1, H)),
        ('dense_w', (2 * H, P)), ('dense_b', (1, P)),
    ]
    keys = jax.random.split(key, len(names_shapes))
    return {name: 0.1 * jax.random.normal(k, shape, dtype=jnp.float32)
            for (name, shape), k in zip(names_shapes, keys)}


if __name__ == "__main__":
    B, Tc, Ta = 2, 16, 8
    vocab, embed_dim, hidden_dim, polarities_dim = 20, 32, 32, 3

    root = jax.random.PRNGKey(0)
    k_params, k_text, k_asp = jax.random.split(root, 3)
    params = init_params(k_params, vocab, embed_dim, hidden_dim, polarities_dim)
    kparams = prepare_params(params)

    # Padded index sequences (0 == padding token), deterministic lengths.
    text_idx = jax.random.randint(k_text, (B, Tc), 1, vocab, dtype=jnp.int32)
    text_lens = jnp.array([12, 16], dtype=jnp.int32)
    text_idx = jnp.where(jnp.arange(Tc)[None, :] < text_lens[:, None], text_idx, 0)

    asp_idx = jax.random.randint(k_asp, (B, Ta), 1, vocab, dtype=jnp.int32)
    asp_lens = jnp.array([3, 5], dtype=jnp.int32)
    asp_idx = jnp.where(jnp.arange(Ta)[None, :] < asp_lens[:, None], asp_idx, 0)

    out = jax.block_until_ready(ian_forward(kparams, text_idx, asp_idx, polarities_dim))
    ref = jax.block_until_ready(ian_ref(params, text_idx, asp_idx))

    assert out.shape == (B, polarities_dim), out.shape
    assert bool(jnp.all(jnp.isfinite(out)))
    assert bool(jnp.allclose(out, ref, atol=2e-2, rtol=2e-2)), (out, ref)

    print("KERNEL_OK")
</pallas_src>

<mosaic_0001>
module attributes {stable_mosaic.version = 11 : i64} {
  func.func @_lstm_kernel(%arg0: i32, %arg1: memref<8x16x32xbf16, #tpu.memory_space<vmem>>, %arg2: memref<16x1xi32, #tpu.memory_space<vmem>>, %arg3: memref<4x32x32xbf16, #tpu.memory_space<vmem>>, %arg4: memref<4x32x32xbf16, #tpu.memory_space<vmem>>, %arg5: memref<4x1x32xf32, #tpu.memory_space<vmem>>, %arg6: memref<8x16x32xbf16, #tpu.memory_space<vmem>>, %arg7: memref<8x16x32xf32, #tpu.memory_space<vmem>>, %arg8: memref<8x16x32xf32, #tpu.memory_space<vmem>>, %arg9: memref<8x16x32xf32, #tpu.memory_space<vmem>>, %arg10: memref<8x16x32xf32, #tpu.memory_space<vmem>>) attributes {dimension_semantics = [#tpu.dimension_semantics<parallel>], iteration_bounds = array<i64: 1>, scalar_prefetch = 0 : i64, scratch_operands = 4 : i64, tpu.core_type = #tpu.core_type<tc>, window_params = [{transform_indices = @transform_0, window_bounds = array<i64: 8, 16, 32>}, {transform_indices = @transform_1, window_bounds = array<i64: 16, 1>}, {pipeline_mode = #tpu.pipeline_mode<synchronous>, transform_indices = @transform_2, window_bounds = array<i64: 4, 32, 32>}, {pipeline_mode = #tpu.pipeline_mode<synchronous>, transform_indices = @transform_3, window_bounds = array<i64: 4, 32, 32>}, {pipeline_mode = #tpu.pipeline_mode<synchronous>, transform_indices = @transform_4, window_bounds = array<i64: 4, 1, 32>}, {transform_indices = @transform_5, window_bounds = array<i64: 8, 16, 32>}]} {
    %c0 = arith.constant 0 : index
    %c0_0 = arith.constant 0 : index
    %c0_1 = arith.constant 0 : index
    %0 = vector.load %arg1[%c0, %c0_0, %c0_1] : memref<8x16x32xbf16, #tpu.memory_space<vmem>>, vector<8x16x32xbf16>
    %1 = vector.shape_cast %0 : vector<8x16x32xbf16> to vector<128x32xbf16>
    %c0_2 = arith.constant 0 : index
    %c0_3 = arith.constant 0 : index
    %c0_4 = arith.constant 0 : index
    %2 = vector.load %arg3[%c0_2, %c0_3, %c0_4] : memref<4x32x32xbf16, #tpu.memory_space<vmem>>, vector<1x32x32xbf16>
    %3 = vector.shape_cast %2 : vector<1x32x32xbf16> to vector<32x32xbf16>
    %cst = arith.constant dense<0.000000e+00> : vector<128x32xf32>
    %4 = tpu.matmul %1, %3, %cst {dimension_numbers = #tpu.dot_dimension_numbers<[1], [0], [0], [1], [0, 0, 1, 1], [], []>} : vector<128x32xbf16>, vector<32x32xbf16>, vector<128x32xf32> -> vector<128x32xf32>
    %c0_5 = arith.constant 0 : index
    %c0_6 = arith.constant 0 : index
    %c0_7 = arith.constant 0 : index
    %5 = vector.load %arg5[%c0_5, %c0_6, %c0_7] : memref<4x1x32xf32, #tpu.memory_space<vmem>>, vector<1x1x32xf32>
    %6 = vector.shape_cast %5 : vector<1x1x32xf32> to vector<1x32xf32>
    %7 = vector.broadcast %6 : vector<1x32xf32> to vector<128x32xf32>
    %8 = arith.addf %4, %7 : vector<128x32xf32>
    %9 = vector.shape_cast %8 : vector<128x32xf32> to vector<8x16x32xf32>
    %c0_8 = arith.constant 0 : index
    %c0_9 = arith.constant 0 : index
    %c0_10 = arith.constant 0 : index
    %10 = vector.load %arg7[%c0_8, %c0_9, %c0_10] : memref<8x16x32xf32, #tpu.memory_space<vmem>>, vector<8x16x32xf32>
    tpu.vector_store %arg7[%c0_8, %c0_9, %c0_10], %9 {strides = array<i32>} : memref<8x16x32xf32, #tpu.memory_space<vmem>>, vector<8x16x32xf32>,
    %c1 = arith.constant 1 : index
    %c0_11 = arith.constant 0 : index
    %c0_12 = arith.constant 0 : index
    %11 = vector.load %arg3[%c1, %c0_11, %c0_12] : memref<4x32x32xbf16, #tpu.memory_space<vmem>>, vector<1x32x32xbf16>
    %12 = vector.shape_cast %11 : vector<1x32x32xbf16> to vector<32x32xbf16>
    %cst_13 = arith.constant dense<0.000000e+00> : vector<128x32xf32>
    %13 = tpu.matmul %1, %12, %cst_13 {dimension_numbers = #tpu.dot_dimension_numbers<[1], [0], [0], [1], [0, 0, 1, 1], [], []>} : vector<128x32xbf16>, vector<32x32xbf16>, vector<128x32xf32> -> vector<128x32xf32>
    %c1_14 = arith.constant 1 : index
    %c0_15 = arith.constant 0 : index
    %c0_16 = arith.constant 0 : index
    %14 = vector.load %arg5[%c1_14, %c0_15, %c0_16] : memref<4x1x32xf32, #tpu.memory_space<vmem>>, vector<1x1x32xf32>
    %15 = vector.shape_cast %14 : vector<1x1x32xf32> to vector<1x32xf32>
    %16 = vector.broadcast %15 : vector<1x32xf32> to vector<128x32xf32>
    %17 = arith.addf %13, %16 : vector<128x32xf32>
    %18 = vector.shape_cast %17 : vector<128x32xf32> to vector<8x16x32xf32>
    %c0_17 = arith.constant 0 : index
    %c0_18 = arith.constant 0 : index
    %c0_19 = arith.constant 0 : index
    %19 = vector.load %arg8[%c0_17, %c0_18, %c0_19] : memref<8x16x32xf32, #tpu.memory_space<vmem>>, vector<8x16x32xf32>
    tpu.vector_store %arg8[%c0_17, %c0_18, %c0_19], %18 {strides = array<i32>} : memref<8x16x32xf32, #tpu.memory_space<vmem>>, vector<8x16x32xf32>,
    %c2 = arith.constant 2 : index
    %c0_20 = arith.constant 0 : index
    %c0_21 = arith.constant 0 : index
    %20 = vector.load %arg3[%c2, %c0_20, %c0_21] : memref<4x32x32xbf16, #tpu.memory_space<vmem>>, vector<1x32x32xbf16>
    %21 = vector.shape_cast %20 : vector<1x32x32xbf16> to vector<32x32xbf16>
    %cst_22 = arith.constant dense<0.000000e+00> : vector<128x32xf32>
    %22 = tpu.matmul %1, %21, %cst_22 {dimension_numbers = #tpu.dot_dimension_numbers<[1], [0], [0], [1], [0, 0, 1, 1], [], []>} : vector<128x32xbf16>, vector<32x32xbf16>, vector<128x32xf32> -> vector<128x32xf32>
    %c2_23 = arith.constant 2 : index
    %c0_24 = arith.constant 0 : index
    %c0_25 = arith.constant 0 : index
    %23 = vector.load %arg5[%c2_23, %c0_24, %c0_25] : memref<4x1x32xf32, #tpu.memory_space<vmem>>, vector<1x1x32xf32>
    %24 = vector.shape_cast %23 : vector<1x1x32xf32> to vector<1x32xf32>
    %25 = vector.broadcast %24 : vector<1x32xf32> to vector<128x32xf32>
    %26 = arith.addf %22, %25 : vector<128x32xf32>
    %27 = vector.shape_cast %26 : vector<128x32xf32> to vector<8x16x32xf32>
    %c0_26 = arith.constant 0 : index
    %c0_27 = arith.constant 0 : index
    %c0_28 = arith.constant 0 : index
    %28 = vector.load %arg9[%c0_26, %c0_27, %c0_28] : memref<8x16x32xf32, #tpu.memory_space<vmem>>, vector<8x16x32xf32>
    tpu.vector_store %arg9[%c0_26, %c0_27, %c0_28], %27 {strides = array<i32>} : memref<8x16x32xf32, #tpu.memory_space<vmem>>, vector<8x16x32xf32>,
    %c3 = arith.constant 3 : index
    %c0_29 = arith.constant 0 : index
    %c0_30 = arith.constant 0 : index
    %29 = vector.load %arg3[%c3, %c0_29, %c0_30] : memref<4x32x32xbf16, #tpu.memory_space<vmem>>, vector<1x32x32xbf16>
    %30 = vector.shape_cast %29 : vector<1x32x32xbf16> to vector<32x32xbf16>
    %cst_31 = arith.constant dense<0.000000e+00> : vector<128x32xf32>
    %31 = tpu.matmul %1, %30, %cst_31 {dimension_numbers = #tpu.dot_dimension_numbers<[1], [0], [0], [1], [0, 0, 1, 1], [], []>} : vector<128x32xbf16>, vector<32x32xbf16>, vector<128x32xf32> -> vector<128x32xf32>
    %c3_32 = arith.constant 3 : index
    %c0_33 = arith.constant 0 : index
    %c0_34 = arith.constant 0 : index
    %32 = vector.load %arg5[%c3_32, %c0_33, %c0_34] : memref<4x1x32xf32, #tpu.memory_space<vmem>>, vector<1x1x32xf32>
    %33 = vector.shape_cast %32 : vector<1x1x32xf32> to vector<1x32xf32>
    %34 = vector.broadcast %33 : vector<1x32xf32> to vector<128x32xf32>
    %35 = arith.addf %31, %34 : vector<128x32xf32>
    %36 = vector.shape_cast %35 : vector<128x32xf32> to vector<8x16x32xf32>
    %c0_35 = arith.constant 0 : index
    %c0_36 = arith.constant 0 : index
    %c0_37 = arith.constant 0 : index
    %37 = vector.load %arg10[%c0_35, %c0_36, %c0_37] : memref<8x16x32xf32, #tpu.memory_space<vmem>>, vector<8x16x32xf32>
    tpu.vector_store %arg10[%c0_35, %c0_36, %c0_37], %36 {strides = array<i32>} : memref<8x16x32xf32, #tpu.memory_space<vmem>>, vector<8x16x32xf32>,
    %c0_38 = arith.constant 0 : index
    %c0_39 = arith.constant 0 : index
    %c0_40 = arith.constant 0 : index
    %38 = vector.load %arg4[%c0_38, %c0_39, %c0_40] : memref<4x32x32xbf16, #tpu.memory_space<vmem>>, vector<1x32x32xbf16>
    %39 = vector.shape_cast %38 : vector<1x32x32xbf16> to vector<32x32xbf16>
    %c1_41 = arith.constant 1 : index
    %c0_42 = arith.constant 0 : index
    %c0_43 = arith.constant 0 : index
    %40 = vector.load %arg4[%c1_41, %c0_42, %c0_43] : memref<4x32x32xbf16, #tpu.memory_space<vmem>>, vector<1x32x32xbf16>
    %41 = vector.shape_cast %40 : vector<1x32x32xbf16> to vector<32x32xbf16>
    %c2_44 = arith.constant 2 : index
    %c0_45 = arith.constant 0 : index
    %c0_46 = arith.constant 0 : index
    %42 = vector.load %arg4[%c2_44, %c0_45, %c0_46] : memref<4x32x32xbf16, #tpu.memory_space<vmem>>, vector<1x32x32xbf16>
    %43 = vector.shape_cast %42 : vector<1x32x32xbf16> to vector<32x32xbf16>
    %c3_47 = arith.constant 3 : index
    %c0_48 = arith.constant 0 : index
    %c0_49 = arith.constant 0 : index
    %44 = vector.load %arg4[%c3_47, %c0_48, %c0_49] : memref<4x32x32xbf16, #tpu.memory_space<vmem>>, vector<1x32x32xbf16>
    %45 = vector.shape_cast %44 : vector<1x32x32xbf16> to vector<32x32xbf16>
    %c0_50 = arith.constant 0 : index
    %c0_51 = arith.constant 0 : index
    %46 = vector.load %arg2[%c0_50, %c0_51] : memref<16x1xi32, #tpu.memory_space<vmem>>, vector<16x1xi32>
    %cst_52 = arith.constant 0.000000e+00 : f32
    %47 = vector.broadcast %cst_52 : f32 to vector<16x32xf32>
    %c0_i32 = arith.constant 0 : i32
    %c8_i32 = arith.constant 8 : i32
    %48 = arith.addi %c0_i32, %c8_i32 : i32
    %c1_i32 = arith.constant 1 : i32
    %49:2 = scf.for %arg11 = %c0_i32 to %48 step %c1_i32 iter_args(%arg12 = %47, %arg13 = %47) -> (vector<16x32xf32>, vector<16x32xf32>)  : i32 {
      %50 = arith.truncf %arg12 : vector<16x32xf32> to vector<16x32xbf16>
      %51 = arith.index_cast %arg11 : i32 to index
      %c0_54 = arith.constant 0 : index
      %c0_55 = arith.constant 0 : index
      %52 = vector.load %arg7[%51, %c0_54, %c0_55] : memref<8x16x32xf32, #tpu.memory_space<vmem>>, vector<1x16x32xf32>
      %53 = vector.shape_cast %52 : vector<1x16x32xf32> to vector<16x32xf32>
      %cst_56 = arith.constant dense<0.000000e+00> : vector<16x32xf32>
      %54 = tpu.matmul %50, %39, %cst_56 {dimension_numbers = #tpu.dot_dimension_numbers<[1], [0], [0], [1], [0, 0, 1, 1], [], []>} : vector<16x32xbf16>, vector<32x32xbf16>, vector<16x32xf32> -> vector<16x32xf32>
      %55 = arith.addf %53, %54 : vector<16x32xf32>
      %56 = arith.index_cast %arg11 : i32 to index
      %c0_57 = arith.constant 0 : index
      %c0_58 = arith.constant 0 : index
      %57 = vector.load %arg8[%56, %c0_57, %c0_58] : memref<8x16x32xf32, #tpu.memory_space<vmem>>, vector<1x16x32xf32>
      %58 = vector.shape_cast %57 : vector<1x16x32xf32> to vector<16x32xf32>
      %cst_59 = arith.constant dense<0.000000e+00> : vector<16x32xf32>
      %59 = tpu.matmul %50, %41, %cst_59 {dimension_numbers = #tpu.dot_dimension_numbers<[1], [0], [0], [1], [0, 0, 1, 1], [], []>} : vector<16x32xbf16>, vector<32x32xbf16>, vector<16x32xf32> -> vector<16x32xf32>
      %60 = arith.addf %58, %59 : vector<16x32xf32>
      %61 = arith.index_cast %arg11 : i32 to index
      %c0_60 = arith.constant 0 : index
      %c0_61 = arith.constant 0 : index
      %62 = vector.load %arg9[%61, %c0_60, %c0_61] : memref<8x16x32xf32, #tpu.memory_space<vmem>>, vector<1x16x32xf32>
      %63 = vector.shape_cast %62 : vector<1x16x32xf32> to vector<16x32xf32>
      %cst_62 = arith.constant dense<0.000000e+00> : vector<16x32xf32>
      %64 = tpu.matmul %50, %43, %cst_62 {dimension_numbers = #tpu.dot_dimension_numbers<[1], [0], [0], [1], [0, 0, 1, 1], [], []>} : vector<16x32xbf16>, vector<32x32xbf16>, vector<16x32xf32> -> vector<16x32xf32>
      %65 = arith.addf %63, %64 : vector<16x32xf32>
      %66 = arith.index_cast %arg11 : i32 to index
      %c0_63 = arith.constant 0 : index
      %c0_64 = arith.constant 0 : index
      %67 = vector.load %arg10[%66, %c0_63, %c0_64] : memref<8x16x32xf32, #tpu.memory_space<vmem>>, vector<1x16x32xf32>
      %68 = vector.shape_cast %67 : vector<1x16x32xf32> to vector<16x32xf32>
      %cst_65 = arith.constant dense<0.000000e+00> : vector<16x32xf32>
      %69 = tpu.matmul %50, %45, %cst_65 {dimension_numbers = #tpu.dot_dimension_numbers<[1], [0], [0], [1], [0, 0, 1, 1], [], []>} : vector<16x32xbf16>, vector<32x32xbf16>, vector<16x32xf32> -> vector<16x32xf32>
      %70 = arith.addf %68, %69 : vector<16x32xf32>
      %71 = arith.negf %55 : vector<16x32xf32>
      %72 = math.exp %71 : vector<16x32xf32>
      %cst_66 = arith.constant 1.000000e+00 : f32
      %73 = vector.broadcast %cst_66 : f32 to vector<16x32xf32>
      %74 = arith.addf %73, %72 : vector<16x32xf32>
      %75 = arith.divf %73, %74 : vector<16x32xf32>
      %76 = arith.negf %60 : vector<16x32xf32>
      %77 = math.exp %76 : vector<16x32xf32>
      %cst_67 = arith.constant 1.000000e+00 : f32
      %78 = vector.broadcast %cst_67 : f32 to vector<16x32xf32>
      %79 = arith.addf %78, %77 : vector<16x32xf32>
      %80 = arith.divf %78, %79 : vector<16x32xf32>
      %81 = math.tanh %65 : vector<16x32xf32>
      %82 = arith.negf %70 : vector<16x32xf32>
      %83 = math.exp %82 : vector<16x32xf32>
      %cst_68 = arith.constant 1.000000e+00 : f32
      %84 = vector.broadcast %cst_68 : f32 to vector<16x32xf32>
      %85 = arith.addf %84, %83 : vector<16x32xf32>
      %86 = arith.divf %84, %85 : vector<16x32xf32>
      %87 = arith.mulf %80, %arg13 : vector<16x32xf32>
      %88 = arith.mulf %75, %81 : vector<16x32xf32>
      %89 = arith.addf %87, %88 : vector<16x32xf32>
      %90 = math.tanh %89 : vector<16x32xf32>
      %91 = arith.mulf %86, %90 : vector<16x32xf32>
      %92 = vector.broadcast %arg11 : i32 to vector<16x1xi32>
      %93 = arith.cmpi sgt, %46, %92 : vector<16x1xi32>
      %cst_69 = arith.constant 0.000000e+00 : f32
      %94 = vector.shape_cast %93 : vector<16x1xi1> to vector<16x1xi1>
      %95 = vector.broadcast %94 : vector<16x1xi1> to vector<16x32xi1>
      %96 = vector.broadcast %cst_69 : f32 to vector<16x32xf32>
      %97 = arith.select %95, %91, %96 : vector<16x32xi1>, vector<16x32xf32>
      %98 = arith.truncf %97 : vector<16x32xf32> to vector<16x32xbf16>
      %99 = arith.index_cast %arg11 : i32 to index
      %c0_70 = arith.constant 0 : index
      %c0_71 = arith.constant 0 : index
      %100 = vector.load %arg6[%99, %c0_70, %c0_71] : memref<8x16x32xbf16, #tpu.memory_space<vmem>>, vector<1x16x32xbf16>
      %101 = vector.shape_cast %100 : vector<1x16x32xbf16> to vector<16x32xbf16>
      %102 = vector.shape_cast %98 : vector<16x32xbf16> to vector<1x16x32xbf16>
      tpu.vector_store %arg6[%99, %c0_70, %c0_71], %102 {strides = array<i32>} : memref<8x16x32xbf16, #tpu.memory_space<vmem>>, vector<1x16x32xbf16>,
      scf.yield %91, %89 : vector<16x32xf32>, vector<16x32xf32>
    }
    %c8_i32_53 = arith.constant 8 : i32
    return
  }
  func.func @transform_0(%arg0: i32) -> (i32, i32, i32) {
    %c0_i32 = arith.constant 0 : i32
    %c0_i32_0 = arith.constant 0 : i32
    %c0_i32_1 = arith.constant 0 : i32
    return %c0_i32, %arg0, %c0_i32_0 : i32, i32, i32
  }
  func.func @transform_1(%arg0: i32) -> (i32, i32) {
    %c0_i32 = arith.constant 0 : i32
    %c0_i32_0 = arith.constant 0 : i32
    return %arg0, %c0_i32 : i32, i32
  }
  func.func @transform_2(%arg0: i32) -> (i32, i32, i32) {
    %c0_i32 = arith.constant 0 : i32
    %c0_i32_0 = arith.constant 0 : i32
    %c0_i32_1 = arith.constant 0 : i32
    %c0_i32_2 = arith.constant 0 : i32
    return %c0_i32, %c0_i32_0, %c0_i32_1 : i32, i32, i32
  }
  func.func @transform_3(%arg0: i32) -> (i32, i32, i32) {
    %c0_i32 = arith.constant 0 : i32
    %c0_i32_0 = arith.constant 0 : i32
    %c0_i32_1 = arith.constant 0 : i32
    %c0_i32_2 = arith.constant 0 : i32
    return %c0_i32, %c0_i32_0, %c0_i32_1 : i32, i32, i32
  }
  func.func @transform_4(%arg0: i32) -> (i32, i32, i32) {
    %c0_i32 = arith.constant 0 : i32
    %c0_i32_0 = arith.constant 0 : i32
    %c0_i32_1 = arith.constant 0 : i32
    %c0_i32_2 = arith.constant 0 : i32
    return %c0_i32, %c0_i32_0, %c0_i32_1 : i32, i32, i32
  }
  func.func @transform_5(%arg0: i32) -> (i32, i32, i32) {
    %c0_i32 = arith.constant 0 : i32
    %c0_i32_0 = arith.constant 0 : i32
    %c0_i32_1 = arith.constant 0 : i32
    return %c0_i32, %arg0, %c0_i32_0 : i32, i32, i32
  }
}

</mosaic_0001>

<llo_original>
// kernel: tpu_custom_call.1
$region0: #{tpu_custom_call.1}
  #allocation0 [shape = 'u32[]', space=smem, size = 0x4, offset = 0x4, fixed_abs, tag = 'smem constant byte address 0x4 - core index']
  #allocation1 [shape = 'u32[144,128]{1,0:T(1,128)}', space=vmem, size = 0x12000, scoped, tag = 'internal scratch']
  #allocation2 [shape = 'f32[8,16,32]{2,1,0:T(8,128)}', space=vmem, size = 0x10000, scoped, tag = 'scratch operand']
  #allocation3 [shape = 'f32[8,16,32]{2,1,0:T(8,128)}', space=vmem, size = 0x10000, scoped, tag = 'scratch operand']
  #allocation4 [shape = 'f32[8,16,32]{2,1,0:T(8,128)}', space=vmem, size = 0x10000, scoped, tag = 'scratch operand']
  #allocation5 [shape = 'f32[8,16,32]{2,1,0:T(8,128)}', space=vmem, size = 0x10000, scoped, tag = 'scratch operand']
  %s0 = inlined_call_operand.hbm [shape: bf16[8,16,32], index: 0, kind: input, shape index: {}]
  %s1 = inlined_call_operand.vmem [shape: s32[16,1], index: 1, kind: input, shape index: {}]
  %s2 = inlined_call_operand.hbm [shape: bf16[4,32,32], index: 2, kind: input, shape index: {}]
  %s3 = inlined_call_operand.hbm [shape: bf16[4,32,32], index: 3, kind: input, shape index: {}]
  %s4 = inlined_call_operand.vmem [shape: f32[4,1,32], index: 4, kind: input, shape index: {}]
  %s5 = inlined_call_operand.hbm [shape: bf16[8,16,32], index: 5, kind: output, shape index: {}]
  %s6 = sld [smem:[#allocation0]]
  $region49: #{tpu_custom_call.1} parent=0
    _
  %s8 = ssub.s32 1, %s6
  %s9 = scalar_select 0, %s8, %s6
  $region1: #{tpu_custom_call.1} parent=0
    #allocation6 [shape = 'u8[32768]{0}', space=vmem, size = 0x8000, scoped, tag = 'input window, operand 0, single buffered']
    #allocation7 [shape = 's32[1]{0}', space=sflag, size = 0x4, scoped, tag = 'scoped memory for tpu_custom_call.1']
    #allocation8 [shape = 's32[1]{0}', space=sflag, size = 0x4, scoped, tag = 'scoped memory for tpu_custom_call.1']
    #allocation9 [shape = 'u8[32768]{0}', space=vmem, size = 0x8000, scoped, tag = 'input window, operand 2, single buffered']
    #allocation10 [shape = 's32[1]{0}', space=sflag, size = 0x4, scoped, tag = 'scoped memory for tpu_custom_call.1']
    #allocation11 [shape = 'u8[32768]{0}', space=vmem, size = 0x8000, scoped, tag = 'input window, operand 3, single buffered']
    #allocation12 [shape = 'u8[32768]{0}', space=vmem, size = 0x8000, scoped, tag = 'output window, operand 0, single buffered']
    %10 = vsyncpa [#allocation7], 0
    %11 = vsyncpa [#allocation10], 0
    %12 = vsyncpa [#allocation8], 0
    // Predicated region
    $region2: #{tpu_custom_call.1} parent=1 // pred_check
      _
    $region3: #{tpu_custom_call.1} parent=1 // pred_check_branch
      %14 = sbr.rel (0) target = $region5
    $region4: #{tpu_custom_call.1} parent=1 // pred_region
      %s16 = ssub.s32 1024, 1024
      %17 = vsyncadd [#allocation7], %s16
      %s18 = sshll.u32 [#allocation6], 4
      %s19 = int_to_ptr.vmem [resolvable:$true] %s18
      %24 = dma.hbm_to_vmem [thread:$0]  %s0, 1024, %s19, [#allocation7], 64, 64, 4
    $region5: #{tpu_custom_call.1} parent=1 // pred_fallthru
      _
    // Predicated region
    $region6: #{tpu_custom_call.1} parent=1 // pred_check
      _
    $region7: #{tpu_custom_call.1} parent=1 // pred_check_branch
      %26 = sbr.rel (0) target = $region9
    $region8: #{tpu_custom_call.1} parent=1 // pred_region
      _
    $region9: #{tpu_custom_call.1} parent=1 // pred_fallthru
      _
    // Predicated region
    $region10: #{tpu_custom_call.1} parent=1 // pred_check
      _
    $region11: #{tpu_custom_call.1} parent=1 // pred_check_branch
      %28 = sbr.rel (0) target = $region13
    $region12: #{tpu_custom_call.1} parent=1 // pred_region
      %s30 = ssub.s32 1024, 1024
      %31 = vsyncadd [#allocation10], %s30
      %s32 = sshll.u32 [#allocation9], 4
      %s33 = int_to_ptr.vmem [resolvable:$true] %s32
      %38 = dma.hbm_to_vmem [thread:$0]  %s2, 1024, %s33, [#allocation10], 64, 64, 4
    $region13: #{tpu_custom_call.1} parent=1 // pred_fallthru
      _
    // Predicated region
    $region14: #{tpu_custom_call.1} parent=1 // pred_check
      _
    $region15: #{tpu_custom_call.1} parent=1 // pred_check_branch
      %40 = sbr.rel (0) target = $region17
    $region16: #{tpu_custom_call.1} parent=1 // pred_region
      %s42 = ssub.s32 1024, 1024
      %43 = vsyncadd [#allocation10], %s42
      %s44 = sshll.u32 [#allocation11], 4
      %s45 = int_to_ptr.vmem [resolvable:$true] %s44
      %50 = dma.hbm_to_vmem [thread:$0]  %s3, 1024, %s45, [#allocation10], 64, 64, 4
    $region17: #{tpu_custom_call.1} parent=1 // pred_fallthru
      _
    // Predicated region
    $region18: #{tpu_custom_call.1} parent=1 // pred_check
      _
    $region19: #{tpu_custom_call.1} parent=1 // pred_check_branch
      %52 = sbr.rel (0) target = $region21
    $region20: #{tpu_custom_call.1} parent=1 // pred_region
      _
    $region21: #{tpu_custom_call.1} parent=1 // pred_fallthru
      _
    // Predicated region
    $region22: #{tpu_custom_call.1} parent=1 // pred_check
      _
    $region23: #{tpu_custom_call.1} parent=1 // pred_check_branch
      %54 = sbr.rel (0) target = $region25
    $region24: #{tpu_custom_call.1} parent=1 // pred_region
      %55 = dma.done [#allocation7], 1024
    $region25: #{tpu_custom_call.1} parent=1 // pred_fallthru
      _
    // Predicated region
    $region26: #{tpu_custom_call.1} parent=1 // pred_check
      _
    $region27: #{tpu_custom_call.1} parent=1 // pred_check_branch
      %57 = sbr.rel (0) target = $region29
    $region28: #{tpu_custom_call.1} parent=1 // pred_region
      %58 = dma.done [#allocation10], 1024
    $region29: #{tpu_custom_call.1} parent=1 // pred_fallthru
      _
    // Predicated region
    $region30: #{tpu_custom_call.1} parent=1 // pred_check
      _
    $region31: #{tpu_custom_call.1} parent=1 // pred_check_branch
      %60 = sbr.rel (0) target = $region33
    $region32: #{tpu_custom_call.1} parent=1 // pred_region
      %61 = dma.done [#allocation10], 1024
    $region33: #{tpu_custom_call.1} parent=1 // pred_fallthru
      _
    %v63 = vld [vmem:[#allocation6] sm:$0xf]
    %v64 = vld [vmem:[#allocation6 + $0x4] sm:$0xf]
    %v65 = vld [vmem:[#allocation6 + $0x8] sm:$0xf]
    %v66 = vld [vmem:[#allocation6 + $0xc] sm:$0xf]
    %v67 = vld [vmem:[#allocation6 + $0x10] sm:$0xf]
    %v68 = vld [vmem:[#allocation6 + $0x14] sm:$0xf]
    %v69 = vld [vmem:[#allocation6 + $0x18] sm:$0xf]
    %v70 = vld [vmem:[#allocation6 + $0x1c] sm:$0xf]
    %v71 = vld [vmem:[#allocation6 + $0x20] sm:$0xf]
    %v72 = vld [vmem:[#allocation6 + $0x24] sm:$0xf]
    %v73 = vld [vmem:[#allocation6 + $0x28] sm:$0xf]
    %v74 = vld [vmem:[#allocation6 + $0x2c] sm:$0xf]
    %v75 = vld [vmem:[#allocation6 + $0x30] sm:$0xf]
    %v76 = vld [vmem:[#allocation6 + $0x34] sm:$0xf]
    %v77 = vld [vmem:[#allocation6 + $0x38] sm:$0xf]
    %v78 = vld [vmem:[#allocation6 + $0x3c] sm:$0xf]
    %v79 = vld [vmem:[#allocation9] sm:$0xf]
    %v80 = vld [vmem:[#allocation9 + $0x4] sm:$0xf]
    %v81 = vld [vmem:[#allocation9 + $0x8] sm:$0xf]
    %v82 = vld [vmem:[#allocation9 + $0xc] sm:$0xf]
    %v83 = vld [vmem:[%s4] sm:$0x1]
    %v85 = vlaneseq
    %v86 = vshrl.u32 %v85, 7
    %v87 = vsub.s32 0, %v86
    %v88 = vrot.slane %v83, %v87
    %v106 = vunpack.c.l.b16 %v63
    %v107 = vunpack.c.l.b16 %v64
    %v108 = vunpack.c.l.b16 %v65
    %v109 = vunpack.c.l.b16 %v66
    %v110 = vunpack.c.l.b16 %v67
    %v111 = vunpack.c.l.b16 %v68
    %v112 = vunpack.c.l.b16 %v69
    %v113 = vunpack.c.l.b16 %v70
    %v114 = vunpack.c.l.b16 %v71
    %v115 = vunpack.c.l.b16 %v72
    %v116 = vunpack.c.l.b16 %v73
    %v117 = vunpack.c.l.b16 %v74
    %v118 = vunpack.c.l.b16 %v75
    %v119 = vunpack.c.l.b16 %v76
    %v120 = vunpack.c.l.b16 %v77
    %v121 = vunpack.c.l.b16 %v78
    %v122 = vpack.c.b16 %v107, %v106
    %v123 = vpack.c.b16 %v109, %v108
    %v124 = vpack.c.b16 %v111, %v110
    %v125 = vpack.c.b16 %v113, %v112
    %v126 = vpack.c.b16 %v115, %v114
    %v127 = vpack.c.b16 %v117, %v116
    %v128 = vpack.c.b16 %v119, %v118
    %v129 = vpack.c.b16 %v121, %v120
    %v134 = vunpack.c.l.b16 %v79
    %v135 = vunpack.c.l.b16 %v80
    %v136 = vunpack.c.l.b16 %v81
    %v137 = vunpack.c.l.b16 %v82
    %v138 = vpack.c.b16 %v135, %v134
    %v139 = vpack.c.b16 %v137, %v136
    %vm142 = vcmask 261120
    %v144 = vsel %vm142, %v122, 0
    %v147 = vsel %vm142, %v123, 0
    %v150 = vsel %vm142, %v124, 0
    %v153 = vsel %vm142, %v125, 0
    %v156 = vsel %vm142, %v126, 0
    %v159 = vsel %vm142, %v127, 0
    %v162 = vsel %vm142, %v128, 0
    %v165 = vsel %vm142, %v129, 0
    %167 = vmatprep.subr.bf16.mxu0 0
    %168 = vmatpush1.bf16.msra.mxu0 %v138
    %169 = vmatprep.subr.bf16.mxu0 0
    %170 = vmatpush1.bf16.msra.mxu0 %v139
    %171 = vmatprep.subr.bf16.mxu0 0
    %172 = vmatpush1.bf16.msra.mxu0 0
    %173 = vmatprep.subr.bf16.mxu0 0
    %174 = vmatpush1.bf16.msra.mxu0 0
    %175 = vmatprep.subr.bf16.mxu0 0
    %176 = vmatpush1.bf16.msra.mxu0 0
    %177 = vmatprep.subr.bf16.mxu0 0
    %178 = vmatpush1.bf16.msra.mxu0 0
    %179 = vmatprep.subr.bf16.mxu0 0
    %180 = vmatpush1.bf16.msra.mxu0 0
    %181 = vmatprep.subr.bf16.mxu0 0
    %182 = vmatpush1.bf16.msra.mxu0 0
    %183 = vmatprep.subr.bf16.mxu0 0
    %184 = vmatpush1.bf16.msra.mxu0 0
    %185 = vmatprep.subr.bf16.mxu0 0
    %186 = vmatpush1.bf16.msra.mxu0 0
    %187 = vmatprep.subr.bf16.mxu0 0
    %188 = vmatpush1.bf16.msra.mxu0 0
    %189 = vmatprep.subr.bf16.mxu0 0
    %190 = vmatpush1.bf16.msra.mxu0 0
    %191 = vmatprep.subr.bf16.mxu0 0
    %192 = vmatpush1.bf16.msra.mxu0 0
    %193 = vmatprep.subr.bf16.mxu0 0
    %194 = vmatpush1.bf16.msra.mxu0 0
    %195 = vmatprep.subr.bf16.mxu0 0
    %196 = vmatpush1.bf16.msra.mxu0 0
    %197 = vmatprep.subr.bf16.mxu0 0
    %198 = vmatpush1.bf16.msra.mxu0 0
    %199 = vmatprep.mubr.bf16.mxu0 0
    %200 = vmatmul.mubr.bf16.gmra.mrb[0].mxu0 %v144
    %v201 = vpop.f32.mrb[0].mxu0
    %v202 = vadd.f32 %v88, %v201
    %v203 = vpop.f32.mrb[0].mxu0
    %v204 = vpop.f32.mrb[0].mxu0
    %v205 = vadd.f32 %v88, %v204
    %v206 = vpop.f32.mrb[0].mxu0
    %207 = vmatprep.mubr.bf16.mxu0 0
    %208 = vmatmul.mubr.bf16.gmra.mrb[0].mxu0 %v147
    %v209 = vpop.f32.mrb[0].mxu0
    %v210 = vadd.f32 %v88, %v209
    %v211 = vpop.f32.mrb[0].mxu0
    %v212 = vpop.f32.mrb[0].mxu0
    %v213 = vadd.f32 %v88, %v212
    %v214 = vpop.f32.mrb[0].mxu0
    %215 = vmatprep.mubr.bf16.mxu0 0
    %216 = vmatmul.mubr.bf16.gmra.mrb[0].mxu0 %v150
    %v217 = vpop.f32.mrb[0].mxu0
    %v218 = vadd.f32 %v88, %v217
    %v219 = vpop.f32.mrb[0].mxu0
    %v220 = vpop.f32.mrb[0].mxu0
    %v221 = vadd.f32 %v88, %v220
    %v222 = vpop.f32.mrb[0].mxu0
    %223 = vmatprep.mubr.bf16.mxu0 0
    %224 = vmatmul.mubr.bf16.gmra.mrb[0].mxu0 %v153
    %v225 = vpop.f32.mrb[0].mxu0
    %v226 = vadd.f32 %v88, %v225
    %v227 = vpop.f32.mrb[0].mxu0
    %v228 = vpop.f32.mrb[0].mxu0
    %v229 = vadd.f32 %v88, %v228
    %v230 = vpop.f32.mrb[0].mxu0
    %231 = vmatprep.mubr.bf16.mxu0 0
    %232 = vmatmul.mubr.bf16.gmra.mrb[0].mxu0 %v156
    %v233 = vpop.f32.mrb[0].mxu0
    %v234 = vadd.f32 %v88, %v233
    %v235 = vpop.f32.mrb[0].mxu0
    %v236 = vpop.f32.mrb[0].mxu0
    %v237 = vadd.f32 %v88, %v236
    %v238 = vpop.f32.mrb[0].mxu0
    %239 = vmatprep.mubr.bf16.mxu0 0
    %240 = vmatmul.mubr.bf16.gmra.mrb[0].mxu0 %v159
    %v241 = vpop.f32.mrb[0].mxu0
    %v242 = vadd.f32 %v88, %v241
    %v243 = vpop.f32.mrb[0].mxu0
    %v244 = vpop.f32.mrb[0].mxu0
    %v245 = vadd.f32 %v88, %v244
    %v246 = vpop.f32.mrb[0].mxu0
    %247 = vmatprep.mubr.bf16.mxu0 0
    %248 = vmatmul.mubr.bf16.gmra.mrb[0].mxu0 %v162
    %v249 = vpop.f32.mrb[0].mxu0
    %v250 = vadd.f32 %v88, %v249
    %v251 = vpop.f32.mrb[0].mxu0
    %v252 = vpop.f32.mrb[0].mxu0
    %v253 = vadd.f32 %v88, %v252
    %v254 = vpop.f32.mrb[0].mxu0
    %255 = vmatprep.mubr.bf16.mxu0 0
    %256 = vmatmul.mubr.bf16.gmra.mrb[0].mxu0 %v165
    %v257 = vpop.f32.mrb[0].mxu0
    %v258 = vadd.f32 %v88, %v257
    %v259 = vpop.f32.mrb[0].mxu0
    %v260 = vpop.f32.mrb[0].mxu0
    %v261 = vadd.f32 %v88, %v260
    %v262 = vpop.f32.mrb[0].mxu0
    %263 = vdwg.mxu0
    %264 = vst.msk [vmem:[#allocation2] sm:$0xff] %vm142, %v202
    %265 = vst.msk [vmem:[#allocation2 + $0x8] sm:$0xff] %vm142, %v205
    %266 = vst.msk [vmem:[#allocation2 + $0x10] sm:$0xff] %vm142, %v210
    %267 = vst.msk [vmem:[#allocation2 + $0x18] sm:$0xff] %vm142, %v213
    %268 = vst.msk [vmem:[#allocation2 + $0x20] sm:$0xff] %vm142, %v218
    %269 = vst.msk [vmem:[#allocation2 + $0x28] sm:$0xff] %vm142, %v221
    %270 = vst.msk [vmem:[#allocation2 + $0x30] sm:$0xff] %vm142, %v226
    %271 = vst.msk [vmem:[#allocation2 + $0x38] sm:$0xff] %vm142, %v229
    %272 = vst.msk [vmem:[#allocation2 + $0x40] sm:$0xff] %vm142, %v234
    %273 = vst.msk [vmem:[#allocation2 + $0x48] sm:$0xff] %vm142, %v237
    %274 = vst.msk [vmem:[#allocation2 + $0x50] sm:$0xff] %vm142, %v242
    %275 = vst.msk [vmem:[#allocation2 + $0x58] sm:$0xff] %vm142, %v245
    %276 = vst.msk [vmem:[#allocation2 + $0x60] sm:$0xff] %vm142, %v250
    %277 = vst.msk [vmem:[#allocation2 + $0x68] sm:$0xff] %vm142, %v253
    %278 = vst.msk [vmem:[#allocation2 + $0x70] sm:$0xff] %vm142, %v258
    %279 = vst.msk [vmem:[#allocation2 + $0x78] sm:$0xff] %vm142, %v261
    %s280 = scalar_lea.vmem [#allocation9], 16
    %v281 = vld [vmem:[%s280] sm:$0xf]
    %v282 = vld [vmem:[%s280 + $0x4] sm:$0xf]
    %v283 = vld [vmem:[%s280 + $0x8] sm:$0xf]
    %v284 = vld [vmem:[%s280 + $0xc] sm:$0xf]
    %s285 = scalar_lea.vmem %s4, 1
    %v286 = vld [vmem:[%s285] sm:$0x1]
    %v288 = vlaneseq
    %v289 = vshrl.u32 %v288, 7
    %v290 = vsub.s32 0, %v289
    %v291 = vrot.slane %v286, %v290
    %v297 = vunpack.c.l.b16 %v281
    %v298 = vunpack.c.l.b16 %v282
    %v299 = vunpack.c.l.b16 %v283
    %v300 = vunpack.c.l.b16 %v284
    %v301 = vpack.c.b16 %v298, %v297
    %v302 = vpack.c.b16 %v300, %v299
    %305 = vmatprep.subr.bf16.mxu0 0
    %306 = vmatpush1.bf16.msra.mxu0 %v301
    %307 = vmatprep.subr.bf16.mxu0 0
    %308 = vmatpush1.bf16.msra.mxu0 %v302
    %309 = vmatprep.subr.bf16.mxu0 0
    %310 = vmatpush1.bf16.msra.mxu0 0
    %311 = vmatprep.subr.bf16.mxu0 0
    %312 = vmatpush1.bf16.msra.mxu0 0
    %313 = vmatprep.subr.bf16.mxu0 0
    %314 = vmatpush1.bf16.msra.mxu0 0
    %315 = vmatprep.subr.bf16.mxu0 0
    %316 = vmatpush1.bf16.msra.mxu0 0
    %317 = vmatprep.subr.bf16.mxu0 0
    %318 = vmatpush1.bf16.msra.mxu0 0
    %319 = vmatprep.subr.bf16.mxu0 0
    %320 = vmatpush1.bf16.msra.mxu0 0
    %321 = vmatprep.subr.bf16.mxu0 0
    %322 = vmatpush1.bf16.msra.mxu0 0
    %323 = vmatprep.subr.bf16.mxu0 0
    %324 = vmatpush1.bf16.msra.mxu0 0
    %325 = vmatprep.subr.bf16.mxu0 0
    %326 = vmatpush1.bf16.msra.mxu0 0
    %327 = vmatprep.subr.bf16.mxu0 0
    %328 = vmatpush1.bf16.msra.mxu0 0
    %329 = vmatprep.subr.bf16.mxu0 0
    %330 = vmatpush1.bf16.msra.mxu0 0
    %331 = vmatprep.subr.bf16.mxu0 0
    %332 = vmatpush1.bf16.msra.mxu0 0
    %333 = vmatprep.subr.bf16.mxu0 0
    %334 = vmatpush1.bf16.msra.mxu0 0
    %335 = vmatprep.subr.bf16.mxu0 0
    %336 = vmatpush1.bf16.msra.mxu0 0
    %337 = vmatprep.mubr.bf16.mxu0 0
    %338 = vmatmul.mubr.bf16.gmra.mrb[0].mxu0 %v144
    %v339 = vpop.f32.mrb[0].mxu0
    %v340 = vadd.f32 %v291, %v339
    %v341 = vpop.f32.mrb[0].mxu0
    %v342 = vpop.f32.mrb[0].mxu0
    %v343 = vadd.f32 %v291, %v342
    %v344 = vpop.f32.mrb[0].mxu0
    %345 = vmatprep.mubr.bf16.mxu0 0
    %346 = vmatmul.mubr.bf16.gmra.mrb[0].mxu0 %v147
    %v347 = vpop.f32.mrb[0].mxu0
    %v348 = vadd.f32 %v291, %v347
    %v349 = vpop.f32.mrb[0].mxu0
    %v350 = vpop.f32.mrb[0].mxu0
    %v351 = vadd.f32 %v291, %v350
    %v352 = vpop.f32.mrb[0].mxu0
    %353 = vmatprep.mubr.bf16.mxu0 0
    %354 = vmatmul.mubr.bf16.gmra.mrb[0].mxu0 %v150
    %v355 = vpop.f32.mrb[0].mxu0
    %v356 = vadd.f32 %v291, %v355
    %v357 = vpop.f32.mrb[0].mxu0
    %v358 = vpop.f32.mrb[0].mxu0
    %v359 = vadd.f32 %v291, %v358
    %v360 = vpop.f32.mrb[0].mxu0
    %361 = vmatprep.mubr.bf16.mxu0 0
    %362 = vmatmul.mubr.bf16.gmra.mrb[0].mxu0 %v153
    %v363 = vpop.f32.mrb[0].mxu0
    %v364 = vadd.f32 %v291, %v363
    %v365 = vpop.f32.mrb[0].mxu0
    %v366 = vpop.f32.mrb[0].mxu0
    %v367 = vadd.f32 %v291, %v366
    %v368 = vpop.f32.mrb[0].mxu0
    %369 = vmatprep.mubr.bf16.mxu0 0
    %370 = vmatmul.mubr.bf16.gmra.mrb[0].mxu0 %v156
    %v371 = vpop.f32.mrb[0].mxu0
    %v372 = vadd.f32 %v291, %v371
    %v373 = vpop.f32.mrb[0].mxu0
    %v374 = vpop.f32.mrb[0].mxu0
    %v375 = vadd.f32 %v291, %v374
    %v376 = vpop.f32.mrb[0].mxu0
    %377 = vmatprep.mubr.bf16.mxu0 0
    %378 = vmatmul.mubr.bf16.gmra.mrb[0].mxu0 %v159
    %v379 = vpop.f32.mrb[0].mxu0
    %v380 = vadd.f32 %v291, %v379
    %v381 = vpop.f32.mrb[0].mxu0
    %v382 = vpop.f32.mrb[0].mxu0
    %v383 = vadd.f32 %v291, %v382
    %v384 = vpop.f32.mrb[0].mxu0
    %385 = vmatprep.mubr.bf16.mxu0 0
    %386 = vmatmul.mubr.bf16.gmra.mrb[0].mxu0 %v162
    %v387 = vpop.f32.mrb[0].mxu0
    %v388 = vadd.f32 %v291, %v387
    %v389 = vpop.f32.mrb[0].mxu0
    %v390 = vpop.f32.mrb[0].mxu0
    %v391 = vadd.f32 %v291, %v390
    %v392 = vpop.f32.mrb[0].mxu0
    %393 = vmatprep.mubr.bf16.mxu0 0
    %394 = vmatmul.mubr.bf16.gmra.mrb[0].mxu0 %v165
    %v395 = vpop.f32.mrb[0].mxu0
    %v396 = vadd.f32 %v291, %v395
    %v397 = vpop.f32.mrb[0].mxu0
    %v398 = vpop.f32.mrb[0].mxu0
    %v399 = vadd.f32 %v291, %v398
    %v400 = vpop.f32.mrb[0].mxu0
    %401 = vdwg.mxu0
    %402 = vst.msk [vmem:[#allocation3] sm:$0xff] %vm142, %v340
    %403 = vst.msk [vmem:[#allocation3 + $0x8] sm:$0xff] %vm142, %v343
    %404 = vst.msk [vmem:[#allocation3 + $0x10] sm:$0xff] %vm142, %v348
    %405 = vst.msk [vmem:[#allocation3 + $0x18] sm:$0xff] %vm142, %v351
    %406 = vst.msk [vmem:[#allocation3 + $0x20] sm:$0xff] %vm142, %v356
    %407 = vst.msk [vmem:[#allocation3 + $0x28] sm:$0xff] %vm142, %v359
    %408 = vst.msk [vmem:[#allocation3 + $0x30] sm:$0xff] %vm142, %v364
    %409 = vst.msk [vmem:[#allocation3 + $0x38] sm:$0xff] %vm142, %v367
    %410 = vst.msk [vmem:[#allocation3 + $0x40] sm:$0xff] %vm142, %v372
    %411 = vst.msk [vmem:[#allocation3 + $0x48] sm:$0xff] %vm142, %v375
    %412 = vst.msk [vmem:[#allocation3 + $0x50] sm:$0xff] %vm142, %v380
    %413 = vst.msk [vmem:[#allocation3 + $0x58] sm:$0xff] %vm142, %v383
    %414 = vst.msk [vmem:[#allocation3 + $0x60] sm:$0xff] %vm142, %v388
    %415 = vst.msk [vmem:[#allocation3 + $0x68] sm:$0xff] %vm142, %v391
    %416 = vst.msk [vmem:[#allocation3 + $0x70] sm:$0xff] %vm142, %v396
    %417 = vst.msk [vmem:[#allocation3 + $0x78] sm:$0xff] %vm142, %v399
    %s418 = scalar_lea.vmem [#allocation9], 32
    %v419 = vld [vmem:[%s418] sm:$0xf]
    %v420 = vld [vmem:[%s418 + $0x4] sm:$0xf]
    %v421 = vld [vmem:[%s418 + $0x8] sm:$0xf]
    %v422 = vld [vmem:[%s418 + $0xc] sm:$0xf]
    %s423 = scalar_lea.vmem %s4, 2
    %v424 = vld [vmem:[%s423] sm:$0x1]
    %v426 = vlaneseq
    %v427 = vshrl.u32 %v426, 7
    %v428 = vsub.s32 0, %v427
    %v429 = vrot.slane %v424, %v428
    %v435 = vunpack.c.l.b16 %v419
    %v436 = vunpack.c.l.b16 %v420
    %v437 = vunpack.c.l.b16 %v421
    %v438 = vunpack.c.l.b16 %v422
    %v439 = vpack.c.b16 %v436, %v435
    %v440 = vpack.c.b16 %v438, %v437
    %443 = vmatprep.subr.bf16.mxu0 0
    %444 = vmatpush1.bf16.msra.mxu0 %v439
    %445 = vmatprep.subr.bf16.mxu0 0
    %446 = vmatpush1.bf16.msra.mxu0 %v440
    %447 = vmatprep.subr.bf16.mxu0 0
    %448 = vmatpush1.bf16.msra.mxu0 0
    %449 = vmatprep.subr.bf16.mxu0 0
    %450 = vmatpush1.bf16.msra.mxu0 0
    %451 = vmatprep.subr.bf16.mxu0 0
    %452 = vmatpush1.bf16.msra.mxu0 0
    %453 = vmatprep.subr.bf16.mxu0 0
    %454 = vmatpush1.bf16.msra.mxu0 0
    %455 = vmatprep.subr.bf16.mxu0 0
    %456 = vmatpush1.bf16.msra.mxu0 0
    %457 = vmatprep.subr.bf16.mxu0 0
    %458 = vmatpush1.bf16.msra.mxu0 0
    %459 = vmatprep.subr.bf16.mxu0 0
    %460 = vmatpush1.bf16.msra.mxu0 0
    %461 = vmatprep.subr.bf16.mxu0 0
    %462 = vmatpush1.bf16.msra.mxu0 0
    %463 = vmatprep.subr.bf16.mxu0 0
    %464 = vmatpush1.bf16.msra.mxu0 0
    %465 = vmatprep.subr.bf16.mxu0 0
    %466 = vmatpush1.bf16.msra.mxu0 0
    %467 = vmatprep.subr.bf16.mxu0 0
    %468 = vmatpush1.bf16.msra.mxu0 0
    %469 = vmatprep.subr.bf16.mxu0 0
    %470 = vmatpush1.bf16.msra.mxu0 0
    %471 = vmatprep.subr.bf16.mxu0 0
    %472 = vmatpush1.bf16.msra.mxu0 0
    %473 = vmatprep.subr.bf16.mxu0 0
    %474 = vmatpush1.bf16.msra.mxu0 0
    %475 = vmatprep.mubr.bf16.mxu0 0
    %476 = vmatmul.mubr.bf16.gmra.mrb[0].mxu0 %v144
    %v477 = vpop.f32.mrb[0].mxu0
    %v478 = vadd.f32 %v429, %v477
    %v479 = vpop.f32.mrb[0].mxu0
    %v480 = vpop.f32.mrb[0].mxu0
    %v481 = vadd.f32 %v429, %v480
    %v482 = vpop.f32.mrb[0].mxu0
    %483 = vmatprep.mubr.bf16.mxu0 0
    %484 = vmatmul.mubr.bf16.gmra.mrb[0].mxu0 %v147
    %v485 = vpop.f32.mrb[0].mxu0
    %v486 = vadd.f32 %v429, %v485
    %v487 = vpop.f32.mrb[0].mxu0
    %v488 = vpop.f32.mrb[0].mxu0
    %v489 = vadd.f32 %v429, %v488
    %v490 = vpop.f32.mrb[0].mxu0
    %491 = vmatprep.mubr.bf16.mxu0 0
    %492 = vmatmul.mubr.bf16.gmra.mrb[0].mxu0 %v150
    %v493 = vpop.f32.mrb[0].mxu0
    %v494 = vadd.f32 %v429, %v493
    %v495 = vpop.f32.mrb[0].mxu0
    %v496 = vpop.f32.mrb[0].mxu0
    %v497 = vadd.f32 %v429, %v496
    %v498 = vpop.f32.mrb[0].mxu0
    %499 = vmatprep.mubr.bf16.mxu0 0
    %500 = vmatmul.mubr.bf16.gmra.mrb[0].mxu0 %v153
    %v501 = vpop.f32.mrb[0].mxu0
    %v502 = vadd.f32 %v429, %v501
    %v503 = vpop.f32.mrb[0].mxu0
    %v504 = vpop.f32.mrb[0].mxu0
    %v505 = vadd.f32 %v429, %v504
    %v506 = vpop.f32.mrb[0].mxu0
    %507 = vmatprep.mubr.bf16.mxu0 0
    %508 = vmatmul.mubr.bf16.gmra.mrb[0].mxu0 %v156
    %v509 = vpop.f32.mrb[0].mxu0
    %v510 = vadd.f32 %v429, %v509
    %v511 = vpop.f32.mrb[0].mxu0
    %v512 = vpop.f32.mrb[0].mxu0
    %v513 = vadd.f32 %v429, %v512
    %v514 = vpop.f32.mrb[0].mxu0
    %515 = vmatprep.mubr.bf16.mxu0 0
    %516 = vmatmul.mubr.bf16.gmra.mrb[0].mxu0 %v159
    %v517 = vpop.f32.mrb[0].mxu0
    %v518 = vadd.f32 %v429, %v517
    %v519 = vpop.f32.mrb[0].mxu0
    %v520 = vpop.f32.mrb[0].mxu0
    %v521 = vadd.f32 %v429, %v520
    %v522 = vpop.f32.mrb[0].mxu0
    %523 = vmatprep.mubr.bf16.mxu0 0
    %524 = vmatmul.mubr.bf16.gmra.mrb[0].mxu0 %v162
    %v525 = vpop.f32.mrb[0].mxu0
    %v526 = vadd.f32 %v429, %v525
    %v527 = vpop.f32.mrb[0].mxu0
    %v528 = vpop.f32.mrb[0].mxu0
    %v529 = vadd.f32 %v429, %v528
    %v530 = vpop.f32.mrb[0].mxu0
    %531 = vmatprep.mubr.bf16.mxu0 0
    %532 = vmatmul.mubr.bf16.gmra.mrb[0].mxu0 %v165
    %v533 = vpop.f32.mrb[0].mxu0
    %v534 = vadd.f32 %v429, %v533
    %v535 = vpop.f32.mrb[0].mxu0
    %v536 = vpop.f32.mrb[0].mxu0
    %v537 = vadd.f32 %v429, %v536
    %v538 = vpop.f32.mrb[0].mxu0
    %539 = vdwg.mxu0
    %540 = vst.msk [vmem:[#allocation4] sm:$0xff] %vm142, %v478
    %541 = vst.msk [vmem:[#allocation4 + $0x8] sm:$0xff] %vm142, %v481
    %542 = vst.msk [vmem:[#allocation4 + $0x10] sm:$0xff] %vm142, %v486
    %543 = vst.msk [vmem:[#allocation4 + $0x18] sm:$0xff] %vm142, %v489
    %544 = vst.msk [vmem:[#allocation4 + $0x20] sm:$0xff] %vm142, %v494
    %545 = vst.msk [vmem:[#allocation4 + $0x28] sm:$0xff] %vm142, %v497
    %546 = vst.msk [vmem:[#allocation4 + $0x30] sm:$0xff] %vm142, %v502
    %547 = vst.msk [vmem:[#allocation4 + $0x38] sm:$0xff] %vm142, %v505
    %548 = vst.msk [vmem:[#allocation4 + $0x40] sm:$0xff] %vm142, %v510
    %549 = vst.msk [vmem:[#allocation4 + $0x48] sm:$0xff] %vm142, %v513
    %550 = vst.msk [vmem:[#allocation4 + $0x50] sm:$0xff] %vm142, %v518
    %551 = vst.msk [vmem:[#allocation4 + $0x58] sm:$0xff] %vm142, %v521
    %552 = vst.msk [vmem:[#allocation4 + $0x60] sm:$0xff] %vm142, %v526
    %553 = vst.msk [vmem:[#allocation4 + $0x68] sm:$0xff] %vm142, %v529
    %554 = vst.msk [vmem:[#allocation4 + $0x70] sm:$0xff] %vm142, %v534
    %555 = vst.msk [vmem:[#allocation4 + $0x78] sm:$0xff] %vm142, %v537
    %s556 = scalar_lea.vmem [#allocation9], 48
    %v557 = vld [vmem:[%s556] sm:$0xf]
    %v558 = vld [vmem:[%s556 + $0x4] sm:$0xf]
    %v559 = vld [vmem:[%s556 + $0x8] sm:$0xf]
    %v560 = vld [vmem:[%s556 + $0xc] sm:$0xf]
    %s561 = scalar_lea.vmem %s4, 3
    %v562 = vld [vmem:[%s561] sm:$0x1]
    %v564 = vlaneseq
    %v565 = vshrl.u32 %v564, 7
    %v566 = vsub.s32 0, %v565
    %v567 = vrot.slane %v562, %v566
    %v573 = vunpack.c.l.b16 %v557
    %v574 = vunpack.c.l.b16 %v558
    %v575 = vunpack.c.l.b16 %v559
    %v576 = vunpack.c.l.b16 %v560
    %v577 = vpack.c.b16 %v574, %v573
    %v578 = vpack.c.b16 %v576, %v575
    %581 = vmatprep.subr.bf16.mxu0 0
    %582 = vmatpush1.bf16.msra.mxu0 %v577
    %583 = vmatprep.subr.bf16.mxu0 0
    %584 = vmatpush1.bf16.msra.mxu0 %v578
    %585 = vmatprep.subr.bf16.mxu0 0
    %586 = vmatpush1.bf16.msra.mxu0 0
    %587 = vmatprep.subr.bf16.mxu0 0
    %588 = vmatpush1.bf16.msra.mxu0 0
    %589 = vmatprep.subr.bf16.mxu0 0
    %590 = vmatpush1.bf16.msra.mxu0 0
    %591 = vmatprep.subr.bf16.mxu0 0
    %592 = vmatpush1.bf16.msra.mxu0 0
    %593 = vmatprep.subr.bf16.mxu0 0
    %594 = vmatpush1.bf16.msra.mxu0 0
    %595 = vmatprep.subr.bf16.mxu0 0
    %596 = vmatpush1.bf16.msra.mxu0 0
    %597 = vmatprep.subr.bf16.mxu0 0
    %598 = vmatpush1.bf16.msra.mxu0 0
    %599 = vmatprep.subr.bf16.mxu0 0
    %600 = vmatpush1.bf16.msra.mxu0 0
    %601 = vmatprep.subr.bf16.mxu0 0
    %602 = vmatpush1.bf16.msra.mxu0 0
    %603 = vmatprep.subr.bf16.mxu0 0
    %604 = vmatpush1.bf16.msra.mxu0 0
    %605 = vmatprep.subr.bf16.mxu0 0
    %606 = vmatpush1.bf16.msra.mxu0 0
    %607 = vmatprep.subr.bf16.mxu0 0
    %608 = vmatpush1.bf16.msra.mxu0 0
    %609 = vmatprep.subr.bf16.mxu0 0
    %610 = vmatpush1.bf16.msra.mxu0 0
    %611 = vmatprep.subr.bf16.mxu0 0
    %612 = vmatpush1.bf16.msra.mxu0 0
    %613 = vmatprep.mubr.bf16.mxu0 0
    %614 = vmatmul.mubr.bf16.gmra.mrb[0].mxu0 %v144
    %v615 = vpop.f32.mrb[0].mxu0
    %v616 = vadd.f32 %v567, %v615
    %v617 = vpop.f32.mrb[0].mxu0
    %v618 = vpop.f32.mrb[0].mxu0
    %v619 = vadd.f32 %v567, %v618
    %v620 = vpop.f32.mrb[0].mxu0
    %621 = vmatprep.mubr.bf16.mxu0 0
    %622 = vmatmul.mubr.bf16.gmra.mrb[0].mxu0 %v147
    %v623 = vpop.f32.mrb[0].mxu0
    %v624 = vadd.f32 %v567, %v623
    %v625 = vpop.f32.mrb[0].mxu0
    %v626 = vpop.f32.mrb[0].mxu0
    %v627 = vadd.f32 %v567, %v626
    %v628 = vpop.f32.mrb[0].mxu0
    %629 = vmatprep.mubr.bf16.mxu0 0
    %630 = vmatmul.mubr.bf16.gmra.mrb[0].mxu0 %v150
    %v631 = vpop.f32.mrb[0].mxu0
    %v632 = vadd.f32 %v567, %v631
    %v633 = vpop.f32.mrb[0].mxu0
    %v634 = vpop.f32.mrb[0].mxu0
    %v635 = vadd.f32 %v567, %v634
    %v636 = vpop.f32.mrb[0].mxu0
    %637 = vmatprep.mubr.bf16.mxu0 0
    %638 = vmatmul.mubr.bf16.gmra.mrb[0].mxu0 %v153
    %v639 = vpop.f32.mrb[0].mxu0
    %v640 = vadd.f32 %v567, %v639
    %v641 = vpop.f32.mrb[0].mxu0
    %v642 = vpop.f32.mrb[0].mxu0
    %v643 = vadd.f32 %v567, %v642
    %v644 = vpop.f32.mrb[0].mxu0
    %645 = vmatprep.mubr.bf16.mxu0 0
    %646 = vmatmul.mubr.bf16.gmra.mrb[0].mxu0 %v156
    %v647 = vpop.f32.mrb[0].mxu0
    %v648 = vadd.f32 %v567, %v647
    %v649 = vpop.f32.mrb[0].mxu0
    %v650 = vpop.f32.mrb[0].mxu0
    %v651 = vadd.f32 %v567, %v650
    %v652 = vpop.f32.mrb[0].mxu0
    %653 = vmatprep.mubr.bf16.mxu0 0
    %654 = vmatmul.mubr.bf16.gmra.mrb[0].mxu0 %v159
    %v655 = vpop.f32.mrb[0].mxu0
    %v656 = vadd.f32 %v567, %v655
    %v657 = vpop.f32.mrb[0].mxu0
    %v658 = vpop.f32.mrb[0].mxu0
    %v659 = vadd.f32 %v567, %v658
    %v660 = vpop.f32.mrb[0].mxu0
    %661 = vmatprep.mubr.bf16.mxu0 0
    %662 = vmatmul.mubr.bf16.gmra.mrb[0].mxu0 %v162
    %v663 = vpop.f32.mrb[0].mxu0
    %v664 = vadd.f32 %v567, %v663
    %v665 = vpop.f32.mrb[0].mxu0
    %v666 = vpop.f32.mrb[0].mxu0
    %v667 = vadd.f32 %v567, %v666
    %v668 = vpop.f32.mrb[0].mxu0
    %669 = vmatprep.mubr.bf16.mxu0 0
    %670 = vmatmul.mubr.bf16.gmra.mrb[0].mxu0 %v165
    %v671 = vpop.f32.mrb[0].mxu0
    %v672 = vadd.f32 %v567, %v671
    %v673 = vpop.f32.mrb[0].mxu0
    %v674 = vpop.f32.mrb[0].mxu0
    %v675 = vadd.f32 %v567, %v674
    %v676 = vpop.f32.mrb[0].mxu0
    %677 = vdwg.mxu0
    %678 = vst.msk [vmem:[#allocation5] sm:$0xff] %vm142, %v616
    %679 = vst.msk [vmem:[#allocation5 + $0x8] sm:$0xff] %vm142, %v619
    %680 = vst.msk [vmem:[#allocation5 + $0x10] sm:$0xff] %vm142, %v624
    %681 = vst.msk [vmem:[#allocation5 + $0x18] sm:$0xff] %vm142, %v627
    %682 = vst.msk [vmem:[#allocation5 + $0x20] sm:$0xff] %vm142, %v632
    %683 = vst.msk [vmem:[#allocation5 + $0x28] sm:$0xff] %vm142, %v635
    %684 = vst.msk [vmem:[#allocation5 + $0x30] sm:$0xff] %vm142, %v640
    %685 = vst.msk [vmem:[#allocation5 + $0x38] sm:$0xff] %vm142, %v643
    %686 = vst.msk [vmem:[#allocation5 + $0x40] sm:$0xff] %vm142, %v648
    %687 = vst.msk [vmem:[#allocation5 + $0x48] sm:$0xff] %vm142, %v651
    %688 = vst.msk [vmem:[#allocation5 + $0x50] sm:$0xff] %vm142, %v656
    %689 = vst.msk [vmem:[#allocation5 + $0x58] sm:$0xff] %vm142, %v659
    %690 = vst.msk [vmem:[#allocation5 + $0x60] sm:$0xff] %vm142, %v664
    %691 = vst.msk [vmem:[#allocation5 + $0x68] sm:$0xff] %vm142, %v667
    %692 = vst.msk [vmem:[#allocation5 + $0x70] sm:$0xff] %vm142, %v672
    %693 = vst.msk [vmem:[#allocation5 + $0x78] sm:$0xff] %vm142, %v675
    %v694 = vld [vmem:[#allocation11] sm:$0xf]
    %v695 = vld [vmem:[#allocation11 + $0x4] sm:$0xf]
    %v696 = vld [vmem:[#allocation11 + $0x8] sm:$0xf]
    %v697 = vld [vmem:[#allocation11 + $0xc] sm:$0xf]
    %s698 = scalar_lea.vmem [#allocation11], 16
    %v699 = vld [vmem:[%s698] sm:$0xf]
    %v700 = vld [vmem:[%s698 + $0x4] sm:$0xf]
    %v701 = vld [vmem:[%s698 + $0x8] sm:$0xf]
    %v702 = vld [vmem:[%s698 + $0xc] sm:$0xf]
    %s703 = scalar_lea.vmem [#allocation11], 32
    %v704 = vld [vmem:[%s703] sm:$0xf]
    %v705 = vld [vmem:[%s703 + $0x4] sm:$0xf]
    %v706 = vld [vmem:[%s703 + $0x8] sm:$0xf]
    %v707 = vld [vmem:[%s703 + $0xc] sm:$0xf]
    %s708 = scalar_lea.vmem [#allocation11], 48
    %v709 = vld [vmem:[%s708] sm:$0xf]
    %v710 = vld [vmem:[%s708 + $0x4] sm:$0xf]
    %v711 = vld [vmem:[%s708 + $0x8] sm:$0xf]
    %v712 = vld [vmem:[%s708 + $0xc] sm:$0xf]
    %v713 = vld [vmem:[%s1] sm:$0xff]
    %v714 = vld [vmem:[%s1 + $0x8] sm:$0xff]
    loop: start=0, step=1, limit=8
    $region34: #{tpu_custom_call.1} parent=1 // loop_pre_header
      _
    $region35: #{tpu_custom_call.1} parent=1 // loop_header
      %s716 = sphi 0, %s720
      %p717 = scmp.ge.s32.totalorder %s716, 8
      %v721 = vphi 0.0, %v1008
      %v722 = vphi 0.0, %v1009
      %v723 = vphi 0.0, %v1004
      %v724 = vphi 0.0, %v1005
    $region36: #{tpu_custom_call.1} parent=1 // loop_header_branch
      %719 = sbr.rel (%p717) target = $region40
    $region37: #{tpu_custom_call.1} parent=1 // loop_body
      %v725 = vpack.c.bf16 %v722, %v721
      %s726 = smul.u32 %s716, 16
      %s727 = scalar_lea.vmem [#allocation2], %s726
      %v728 = vld [vmem:[%s727] sm:$0xff]
      %v729 = vld [vmem:[%s727 + $0x8] sm:$0xff]
      %v734 = vunpack.c.l.b16 %v694
      %v735 = vunpack.c.l.b16 %v695
      %v736 = vunpack.c.l.b16 %v696
      %v737 = vunpack.c.l.b16 %v697
      %v738 = vpack.c.b16 %v735, %v734
      %v739 = vpack.c.b16 %v737, %v736
      %v743 = vsel %vm142, %v725, 0
      %745 = vmatprep.subr.bf16.mxu0 0
      %746 = vmatpush1.bf16.msra.mxu0 %v738
      %747 = vmatprep.subr.bf16.mxu0 0
      %748 = vmatpush1.bf16.msra.mxu0 %v739
      %749 = vmatprep.subr.bf16.mxu0 0
      %750 = vmatpush1.bf16.msra.mxu0 0
      %751 = vmatprep.subr.bf16.mxu0 0
      %752 = vmatpush1.bf16.msra.mxu0 0
      %753 = vmatprep.subr.bf16.mxu0 0
      %754 = vmatpush1.bf16.msra.mxu0 0
      %755 = vmatprep.subr.bf16.mxu0 0
      %756 = vmatpush1.bf16.msra.mxu0 0
      %757 = vmatprep.subr.bf16.mxu0 0
      %758 = vmatpush1.bf16.msra.mxu0 0
      %759 = vmatprep.subr.bf16.mxu0 0
      %760 = vmatpush1.bf16.msra.mxu0 0
      %761 = vmatprep.subr.bf16.mxu0 0
      %762 = vmatpush1.bf16.msra.mxu0 0
      %763 = vmatprep.subr.bf16.mxu0 0
      %764 = vmatpush1.bf16.msra.mxu0 0
      %765 = vmatprep.subr.bf16.mxu0 0
      %766 = vmatpush1.bf16.msra.mxu0 0
      %767 = vmatprep.subr.bf16.mxu0 0
      %768 = vmatpush1.bf16.msra.mxu0 0
      %769 = vmatprep.subr.bf16.mxu0 0
      %770 = vmatpush1.bf16.msra.mxu0 0
      %771 = vmatprep.subr.bf16.mxu0 0
      %772 = vmatpush1.bf16.msra.mxu0 0
      %773 = vmatprep.subr.bf16.mxu0 0
      %774 = vmatpush1.bf16.msra.mxu0 0
      %775 = vmatprep.subr.bf16.mxu0 0
      %776 = vmatpush1.bf16.msra.mxu0 0
      %777 = vmatprep.mubr.bf16.mxu0 0
      %778 = vmatmul.mubr.bf16.gmra.mrb[0].mxu0 %v743
      %v779 = vpop.f32.mrb[0].mxu0
      %v780 = vadd.f32 0.0, %v779
      %v781 = vpop.f32.mrb[0].mxu0
      %v782 = vpop.f32.mrb[0].mxu0
      %v783 = vadd.f32 0.0, %v782
      %v784 = vpop.f32.mrb[0].mxu0
      %785 = vdwg.mxu0
      %v786 = vadd.f32 %v728, %v780
      %v787 = vadd.f32 %v729, %v783
      %s788 = scalar_lea.vmem [#allocation3], %s726
      %v789 = vld [vmem:[%s788] sm:$0xff]
      %v790 = vld [vmem:[%s788 + $0x8] sm:$0xff]
      %v795 = vunpack.c.l.b16 %v699
      %v796 = vunpack.c.l.b16 %v700
      %v797 = vunpack.c.l.b16 %v701
      %v798 = vunpack.c.l.b16 %v702
      %v799 = vpack.c.b16 %v796, %v795
      %v800 = vpack.c.b16 %v798, %v797
      %803 = vmatprep.subr.bf16.mxu0 0
      %804 = vmatpush1.bf16.msra.mxu0 %v799
      %805 = vmatprep.subr.bf16.mxu0 0
      %806 = vmatpush1.bf16.msra.mxu0 %v800
      %807 = vmatprep.subr.bf16.mxu0 0
      %808 = vmatpush1.bf16.msra.mxu0 0
      %809 = vmatprep.subr.bf16.mxu0 0
      %810 = vmatpush1.bf16.msra.mxu0 0
      %811 = vmatprep.subr.bf16.mxu0 0
      %812 = vmatpush1.bf16.msra.mxu0 0
      %813 = vmatprep.subr.bf16.mxu0 0
      %814 = vmatpush1.bf16.msra.mxu0 0
      %815 = vmatprep.subr.bf16.mxu0 0
      %816 = vmatpush1.bf16.msra.mxu0 0
      %817 = vmatprep.subr.bf16.mxu0 0
      %818 = vmatpush1.bf16.msra.mxu0 0
      %819 = vmatprep.subr.bf16.mxu0 0
      %820 = vmatpush1.bf16.msra.mxu0 0
      %821 = vmatprep.subr.bf16.mxu0 0
      %822 = vmatpush1.bf16.msra.mxu0 0
      %823 = vmatprep.subr.bf16.mxu0 0
      %824 = vmatpush1.bf16.msra.mxu0 0
      %825 = vmatprep.subr.bf16.mxu0 0
      %826 = vmatpush1.bf16.msra.mxu0 0
      %827 = vmatprep.subr.bf16.mxu0 0
      %828 = vmatpush1.bf16.msra.mxu0 0
      %829 = vmatprep.subr.bf16.mxu0 0
      %830 = vmatpush1.bf16.msra.mxu0 0
      %831 = vmatprep.subr.bf16.mxu0 0
      %832 = vmatpush1.bf16.msra.mxu0 0
      %833 = vmatprep.subr.bf16.mxu0 0
      %834 = vmatpush1.bf16.msra.mxu0 0
      %835 = vmatprep.mubr.bf16.mxu0 0
      %836 = vmatmul.mubr.bf16.gmra.mrb[0].mxu0 %v743
      %v837 = vpop.f32.mrb[0].mxu0
      %v838 = vadd.f32 0.0, %v837
      %v839 = vpop.f32.mrb[0].mxu0
      %v840 = vpop.f32.mrb[0].mxu0
      %v841 = vadd.f32 0.0, %v840
      %v842 = vpop.f32.mrb[0].mxu0
      %843 = vdwg.mxu0
      %v844 = vadd.f32 %v789, %v838
      %v845 = vadd.f32 %v790, %v841
      %s846 = scalar_lea.vmem [#allocation4], %s726
      %v847 = vld [vmem:[%s846] sm:$0xff]
      %v848 = vld [vmem:[%s846 + $0x8] sm:$0xff]
      %v853 = vunpack.c.l.b16 %v704
      %v854 = vunpack.c.l.b16 %v705
      %v855 = vunpack.c.l.b16 %v706
      %v856 = vunpack.c.l.b16 %v707
      %v857 = vpack.c.b16 %v854, %v853
      %v858 = vpack.c.b16 %v856, %v855
      %861 = vmatprep.subr.bf16.mxu0 0
      %862 = vmatpush1.bf16.msra.mxu0 %v857
      %863 = vmatprep.subr.bf16.mxu0 0
      %864 = vmatpush1.bf16.msra.mxu0 %v858
      %865 = vmatprep.subr.bf16.mxu0 0
      %866 = vmatpush1.bf16.msra.mxu0 0
      %867 = vmatprep.subr.bf16.mxu0 0
      %868 = vmatpush1.bf16.msra.mxu0 0
      %869 = vmatprep.subr.bf16.mxu0 0
      %870 = vmatpush1.bf16.msra.mxu0 0
      %871 = vmatprep.subr.bf16.mxu0 0
      %872 = vmatpush1.bf16.msra.mxu0 0
      %873 = vmatprep.subr.bf16.mxu0 0
      %874 = vmatpush1.bf16.msra.mxu0 0
      %875 = vmatprep.subr.bf16.mxu0 0
      %876 = vmatpush1.bf16.msra.mxu0 0
      %877 = vmatprep.subr.bf16.mxu0 0
      %878 = vmatpush1.bf16.msra.mxu0 0
      %879 = vmatprep.subr.bf16.mxu0 0
      %880 = vmatpush1.bf16.msra.mxu0 0
      %881 = vmatprep.subr.bf16.mxu0 0
      %882 = vmatpush1.bf16.msra.mxu0 0
      %883 = vmatprep.subr.bf16.mxu0 0
      %884 = vmatpush1.bf16.msra.mxu0 0
      %885 = vmatprep.subr.bf16.mxu0 0
      %886 = vmatpush1.bf16.msra.mxu0 0
      %887 = vmatprep.subr.bf16.mxu0 0
      %888 = vmatpush1.bf16.msra.mxu0 0
      %889 = vmatprep.subr.bf16.mxu0 0
      %890 = vmatpush1.bf16.msra.mxu0 0
      %891 = vmatprep.subr.bf16.mxu0 0
      %892 = vmatpush1.bf16.msra.mxu0 0
      %893 = vmatprep.mubr.bf16.mxu0 0
      %894 = vmatmul.mubr.bf16.gmra.mrb[0].mxu0 %v743
      %v895 = vpop.f32.mrb[0].mxu0
      %v896 = vadd.f32 0.0, %v895
      %v897 = vpop.f32.mrb[0].mxu0
      %v898 = vpop.f32.mrb[0].mxu0
      %v899 = vadd.f32 0.0, %v898
      %v900 = vpop.f32.mrb[0].mxu0
      %901 = vdwg.mxu0
      %v902 = vadd.f32 %v847, %v896
      %v903 = vadd.f32 %v848, %v899
      %s904 = scalar_lea.vmem [#allocation5], %s726
      %v905 = vld [vmem:[%s904] sm:$0xff]
      %v906 = vld [vmem:[%s904 + $0x8] sm:$0xff]
      %v911 = vunpack.c.l.b16 %v709
      %v912 = vunpack.c.l.b16 %v710
      %v913 = vunpack.c.l.b16 %v711
      %v914 = vunpack.c.l.b16 %v712
      %v915 = vpack.c.b16 %v912, %v911
      %v916 = vpack.c.b16 %v914, %v913
      %919 = vmatprep.subr.bf16.mxu0 0
      %920 = vmatpush1.bf16.msra.mxu0 %v915
      %921 = vmatprep.subr.bf16.mxu0 0
      %922 = vmatpush1.bf16.msra.mxu0 %v916
      %923 = vmatprep.subr.bf16.mxu0 0
      %924 = vmatpush1.bf16.msra.mxu0 0
      %925 = vmatprep.subr.bf16.mxu0 0
      %926 = vmatpush1.bf16.msra.mxu0 0
      %927 = vmatprep.subr.bf16.mxu0 0
      %928 = vmatpush1.bf16.msra.mxu0 0
      %929 = vmatprep.subr.bf16.mxu0 0
      %930 = vmatpush1.bf16.msra.mxu0 0
      %931 = vmatprep.subr.bf16.mxu0 0
      %932 = vmatpush1.bf16.msra.mxu0 0
      %933 = vmatprep.subr.bf16.mxu0 0
      %934 = vmatpush1.bf16.msra.mxu0 0
      %935 = vmatprep.subr.bf16.mxu0 0
      %936 = vmatpush1.bf16.msra.mxu0 0
      %937 = vmatprep.subr.bf16.mxu0 0
      %938 = vmatpush1.bf16.msra.mxu0 0
      %939 = vmatprep.subr.bf16.mxu0 0
      %940 = vmatpush1.bf16.msra.mxu0 0
      %941 = vmatprep.subr.bf16.mxu0 0
      %942 = vmatpush1.bf16.msra.mxu0 0
      %943 = vmatprep.subr.bf16.mxu0 0
      %944 = vmatpush1.bf16.msra.mxu0 0
      %945 = vmatprep.subr.bf16.mxu0 0
      %946 = vmatpush1.bf16.msra.mxu0 0
      %947 = vmatprep.subr.bf16.mxu0 0
      %948 = vmatpush1.bf16.msra.mxu0 0
      %949 = vmatprep.subr.bf16.mxu0 0
      %950 = vmatpush1.bf16.msra.mxu0 0
      %951 = vmatprep.mubr.bf16.mxu0 0
      %952 = vmatmul.mubr.bf16.gmra.mrb[0].mxu0 %v743
      %v953 = vpop.f32.mrb[0].mxu0
      %v954 = vadd.f32 0.0, %v953
      %v955 = vpop.f32.mrb[0].mxu0
      %v956 = vpop.f32.mrb[0].mxu0
      %v957 = vadd.f32 0.0, %v956
      %v958 = vpop.f32.mrb[0].mxu0
      %959 = vdwg.mxu0
      %v960 = vadd.f32 %v905, %v954
      %v961 = vadd.f32 %v906, %v957
      %v962 = vxor.u32 %v786, 2147483648
      %v963 = vxor.u32 %v787, 2147483648
      %v964 = vmul.f32 %v962, 1.442695
      %v965 = vpow.pop %v964
      %v966 = vmul.f32 %v963, 1.442695
      %v967 = vpow.pop %v966
      %v968 = vadd.f32 %v965, 1.0
      %v969 = vadd.f32 %v967, 1.0
      %v970 = vrcp.pop %v968
      %v971 = vmul.f32 1.0, %v970
      %v972 = vrcp.pop %v969
      %v973 = vmul.f32 1.0, %v972
      %v974 = vxor.u32 %v844, 2147483648
      %v975 = vxor.u32 %v845, 2147483648
      %v976 = vmul.f32 %v974, 1.442695
      %v977 = vpow.pop %v976
      %v978 = vmul.f32 %v975, 1.442695
      %v979 = vpow.pop %v978
      %v980 = vadd.f32 %v977, 1.0
      %v981 = vadd.f32 %v979, 1.0
      %v982 = vrcp.pop %v980
      %v983 = vmul.f32 1.0, %v982
      %v984 = vrcp.pop %v981
      %v985 = vmul.f32 1.0, %v984
      %v986 = vtanh.pop %v902
      %v987 = vtanh.pop %v903
      %v988 = vxor.u32 %v960, 2147483648
      %v989 = vxor.u32 %v961, 2147483648
      %v990 = vmul.f32 %v988, 1.442695
      %v991 = vpow.pop %v990
      %v992 = vmul.f32 %v989, 1.442695
      %v993 = vpow.pop %v992
      %v994 = vadd.f32 %v991, 1.0
      %v995 = vadd.f32 %v993, 1.0
      %v996 = vrcp.pop %v994
      %v997 = vmul.f32 1.0, %v996
      %v998 = vrcp.pop %v995
      %v999 = vmul.f32 1.0, %v998
      %v1000 = vmul.f32 %v983, %v723
      %v1001 = vmul.f32 %v985, %v724
      %v1002 = vmul.f32 %v971, %v986
      %v1003 = vmul.f32 %v973, %v987
      %v1004 = vadd.f32 %v1000, %v1002
      %v1005 = vadd.f32 %v1001, %v1003
      %v1006 = vtanh.pop %v1004
      %v1007 = vtanh.pop %v1005
      %v1008 = vmul.f32 %v997, %v1006
      %v1009 = vmul.f32 %v999, %v1007
      %v1010 = vstv %s716
      %vm1011 = vcmp.gt.s32.totalorder %v713, %v1010
      %vm1012 = vcmp.gt.s32.totalorder %v714, %v1010
      %v1013 = vsel %vm1011, 1, 0
      %v1014 = vsel %vm1012, 1, 0
      %1015 = vset.pattern.permute.xlu0 0
      %1016 = vperm.xlu0 %1015, %v1013
      %v1017 = vpop.permute.xlu0 %1016
      %1018 = vset.pattern.permute.xlu0 0
      %1019 = vperm.xlu0 %1018, %v1014
      %v1020 = vpop.permute.xlu0 %1019
      %vm1021 = vcmp.eq.s32.totalorder %v1017, 1
      %vm1022 = vcmp.eq.s32.totalorder %v1020, 1
      %v1023 = vsel %vm1021, %v1008, 0.0
      %v1024 = vsel %vm1022, %v1009, 0.0
      %v1025 = vpack.c.bf16 %v1024, %v1023
      %v1027 = vunpack.c.l.b16 %v1025
      %v1028 = vunpack.c.h.b16 %v1025
      %v1029 = vpack.c.b16 %v1027, %v1027
      %v1030 = vpack.c.b16 %v1028, %v1028
      %s1033 = smul.u32 %s716, 2
      %s1034 = smul.addr %s1033, 4
      %s1035 = scalar_lea.vmem [#allocation12], %s1034
      %vm1036 = vcmask 257024
      %1037 = vst.msk [vmem:[%s1035] sm:$0xf] %vm1036, %v1029
      %1038 = vst.msk [vmem:[%s1035 + $0x4] sm:$0xf] %vm1036, %v1030
    $region38: #{tpu_custom_call.1} parent=1 // loop_footer
      %s720 = sadd.s32 1, %s716
    $region39: #{tpu_custom_call.1} parent=1 // loop_footer_branch
      %715 = sbr.rel target = $region35
    $region40: #{tpu_custom_call.1} parent=1 // loop_exit
      _
    // Predicated region
    $region41: #{tpu_custom_call.1} parent=1 // pred_check
      _
    $region42: #{tpu_custom_call.1} parent=1 // pred_check_branch
      %1040 = sbr.rel (0) target = $region44
    $region43: #{tpu_custom_call.1} parent=1 // pred_region
      %s1042 = ssub.s32 1024, 1024
      %1043 = vsyncadd [#allocation8], %s1042
      %s1044 = sshll.u32 [#allocation12], 4
      %s1045 = int_to_ptr.vmem [resolvable:$true] %s1044
      %1050 = dma.vmem_to_hbm [thread:$0]  %s1045, 1024, %s5, [#allocation8], 64, 64, 4
    $region44: #{tpu_custom_call.1} parent=1 // pred_fallthru
      _
    // Predicated region
    $region45: #{tpu_custom_call.1} parent=1 // pred_check
      _
    $region46: #{tpu_custom_call.1} parent=1 // pred_check_branch
      %1052 = sbr.rel (0) target = $region48
    $region47: #{tpu_custom_call.1} parent=1 // pred_region
      %1053 = dma.done [#allocation8], 1024
    $region48: #{tpu_custom_call.1} parent=1 // pred_fallthru
      _
    %1054 = vsyncpa [#allocation7], 1
    %1055 = vsyncpa [#allocation10], 1
    %1056 = vsyncpa [#allocation8], 1

</llo_original>
